<compile_context>
chip_gen: v7x
topology: tpu7x:2x2x1
jax: 0.10.0
libtpu: 0.0.40
codegen_flags: <defaults>
</compile_context>

<pallas_src>
import functools

import jax
import jax.numpy as jnp
from jax import lax
from jax.experimental import pallas as pl
from jax.experimental.pallas import tpu as pltpu


def _radial_flow_kernel(a_ref, b_ref, c_ref, x_ref, xo_ref, ld_ref, *,
                        dim, block_b, total_rows, ragged):
    # Scalar parameter transforms (scalar/EUP work, negligible per step).
    a = jnp.exp(a_ref[0])                              # a = exp(self.a)
    b = -a + jax.nn.softplus(b_ref[0])                 # b = -a + softplus(self.b)

    x = x_ref[...].astype(jnp.float32)                 # (TB, D)
    c = c_ref[...].astype(jnp.float32)                 # (1, D), broadcasts over rows
    diff = x - c                                       # (TB, D)

    if ragged:
        # Zero rows past the end of the batch in the final (partial) block so
        # the sqrt/log below never see stale VMEM garbage.  Stores for those
        # rows are discarded by the partial-block writeback anyway.
        row = (pl.program_id(0) * block_b
               + lax.broadcasted_iota(jnp.int32, (block_b, 1), 0))
        diff = jnp.where(row < total_rows, diff, 0.0)

    sq = diff * diff                                   # (TB, D)

    # ---- per-row ||x-c||^2, lane-oriented, via the idle MXU ----------------
    # ones(8,D) @ sq^T puts the row sums on the LANE axis -> log_det output
    # block is lane-dense (no masked partial stores / micro writeback DMA).
    # HIGHEST precision keeps the f32 matmul accurate to ~1e-7 relative.
    ones8 = jnp.ones((8, dim), jnp.float32)
    r2_row8 = lax.dot_general(
        ones8, sq, (((1,), (1,)), ((), ())),
        preferred_element_type=jnp.float32,
        precision=lax.Precision.HIGHEST)               # (8, TB), rows identical

    # ---- column-oriented r for the x update (broadcast over lanes) ---------
    r_col = jnp.sqrt(jnp.sum(sq, axis=1, keepdims=True))        # (TB, 1)
    tmp_col = b * pl.reciprocal(a + r_col, approx=False)        # b * h(r)
    xo_ref[...] = (x + tmp_col * diff).astype(xo_ref.dtype)

    # ---- lane-dense log_det -------------------------------------------------
    r_row = jnp.sqrt(r2_row8)                          # (8, TB)
    h_row = pl.reciprocal(a + r_row, approx=False)     # h(r) = 1/(a+r)
    tmp_row = b * h_row                                # b * h(r)
    # 1 + tmp + b*h'(r)*r == 1 + a*b*h(r)^2   (h' = -h^2); avoids cancellation.
    log_det = ((dim - 1) * jnp.log(1.0 + tmp_row)
               + jnp.log(1.0 + a * b * h_row * h_row))           # (8, TB)
    ld_ref[0] = log_det[0:1, :].astype(ld_ref.dtype)   # store row 0: (1, TB)


def _vmem_budget_bytes():
    """(tile_budget, vmem_limit) chosen per TPU generation."""
    try:
        vmem = pltpu.get_tpu_info().vmem_capacity_bytes
    except Exception:
        vmem = 64 << 20                        # assume the smallest (v7x) if query fails
    if vmem >= (96 << 20):                     # v5e / v6e: 128 MiB physical VMEM
        return 48 << 20, 64 << 20
    return 20 << 20, 32 << 20                  # v7x: 64 MiB physical, 32 MiB scoped default


def _choose_block_b(B, D, tile_budget):
    """Row-tile size: roofline-sized DMA tiles that still fit VMEM."""
    # VMEM per tile row: double-buffered x in + x out blocks (4 tiles) plus
    # ~4 tile-sized f32 intermediates live in the body, plus the sublane-padded
    # lane-dense log_det block (double-buffered).
    per_row = 8 * D * 4 + 2 * 8 * 4
    cap = max(8, tile_budget // per_row)
    # DMA-efficiency target: ~4 MiB of x per tile.
    target = max(8, (4 << 20) // (D * 4))
    block = max(8, (min(cap, target) // 8) * 8)
    if B <= block:
        return B                               # single block; block == full dim is legal
    # Prefer >= 8 grid steps (>= 4 per TensorCore under v7x megacore), but never
    # shrink the tile below a ~512-row / ~512-KiB roofline floor.
    floor = max(512, (1 << 19) // (D * 4))
    floor = max(8, (floor // 8) * 8)
    if B >= 8 * floor:
        per_step = -(-B // 8)                  # cdiv(B, 8)
        per_step = ((per_step + 7) // 8) * 8
        block = min(block, max(floor, per_step))
    return block


def radial_flow(x, a_param, b_param, c_param, *, block_b=None):
    """Pallas implementation of RadialFlow.forward.

    Args:
      x: (B, D) float32 input.
      a_param: (1,) parameter `a`.
      b_param: (1,) parameter `b`.
      c_param: (1, D) parameter `c`.
    Returns:
      (x_out, log_det): shapes (B, D) and (B, 1).
    """
    B, D = x.shape
    tile_budget, vmem_limit = _vmem_budget_bytes()
    if block_b is None:
        block_b = _choose_block_b(B, D, tile_budget)
    block_b = min(int(block_b), B)
    if block_b < B:
        block_b = max(8, (block_b // 8) * 8)   # sublane block dim must be 8-aligned
    n_blocks = pl.cdiv(B, block_b)
    ragged = (B % block_b) != 0

    a1 = a_param.reshape(1).astype(jnp.float32)
    b1 = b_param.reshape(1).astype(jnp.float32)
    c2 = c_param.reshape(1, D).astype(jnp.float32)

    kernel = functools.partial(_radial_flow_kernel, dim=D, block_b=block_b,
                               total_rows=B, ragged=ragged)

    cost = pl.CostEstimate(
        flops=B * (14 * D + 40),
        transcendentals=6 * B,
        bytes_accessed=2 * B * D * 4 + n_blocks * block_b * 4 + D * 4 + 8,
    )

    x_out, ld_raw = pl.pallas_call(
        kernel,
        out_shape=(
            jax.ShapeDtypeStruct((B, D), x.dtype),
            jax.ShapeDtypeStruct((n_blocks, 1, block_b), jnp.float32),
        ),
        grid_spec=pltpu.PrefetchScalarGridSpec(
            num_scalar_prefetch=0,
            grid=(n_blocks,),
            in_specs=[
                # scalar params live in SMEM as 1-D refs (no [8,128] padding)
                pl.BlockSpec(memory_space=pltpu.SMEM),
                pl.BlockSpec(memory_space=pltpu.SMEM),
                # c: (1, D), same block every step (stays resident)
                pl.BlockSpec((1, D), lambda i: (0, 0)),
                # x: tiled over batch; last block may be partial
                pl.BlockSpec((block_b, D), lambda i: (i, 0)),
            ],
            out_specs=[
                pl.BlockSpec((block_b, D), lambda i: (i, 0)),
                # lane-dense log_det: one (1, 1, block_b) row per grid step
                pl.BlockSpec((1, 1, block_b), lambda i: (i, 0, 0)),
            ],
        ),
        compiler_params=pltpu.CompilerParams(
            dimension_semantics=("parallel",),
            vmem_limit_bytes=vmem_limit,
        ),
        cost_estimate=cost,
    )(a1, b1, c2, x)

    # (n_blocks, 1, block_b) -> (B, 1); the flatten is a free contiguous view,
    # the [:B] slice copies only 4*B bytes (only non-trivial when ragged).
    log_det = ld_raw.reshape(n_blocks * block_b)[:B].reshape(B, 1)
    return x_out, log_det


def radial_flow_ref(x, a_param, b_param, c_param):
    """Pure-JAX reference matching the PyTorch forward exactly."""
    a = jnp.exp(a_param)                       # (1,)
    b = -a + jax.nn.softplus(b_param)          # (1,)
    c = c_param                                # (1, D)
    r = jnp.linalg.norm(x - c, axis=1, keepdims=True)
    h = 1.0 / (a + r)
    tmp = b * h
    x_out = x + tmp * (x - c)
    d = x.shape[1]
    log_det = (d - 1) * jnp.log(1.0 + tmp) + jnp.log(1.0 + tmp + b * (-(h ** 2)) * r)
    return x_out, log_det


if __name__ == "__main__":
    key = jax.random.PRNGKey(0)
    k_x, k_a, k_b, k_c = jax.random.split(key, 4)

    # Small but lane-dense demo shapes (D multiple of 128).
    B, D = 256, 128
    x = jax.random.normal(k_x, (B, D), dtype=jnp.float32)
    a_param = jax.random.normal(k_a, (1,), dtype=jnp.float32)
    b_param = jax.random.normal(k_b, (1,), dtype=jnp.float32)
    c_param = jax.random.normal(k_c, (1, D), dtype=jnp.float32)

    x_out, log_det = radial_flow(x, a_param, b_param, c_param)
    jax.block_until_ready((x_out, log_det))

    x_ref, ld_ref = radial_flow_ref(x, a_param, b_param, c_param)
    assert x_out.shape == (B, D) and log_det.shape == (B, 1)
    assert jnp.allclose(x_out, x_ref, atol=1e-5, rtol=1e-5)
    assert jnp.allclose(log_det, ld_ref, atol=1e-5, rtol=1e-5)

    # Ragged batch + multi-step grid: exercises the in-kernel partial-block
    # row mask (no jnp.pad / output slicing of x anymore).
    B2 = 100
    x2 = jax.random.normal(k_x, (B2, D), dtype=jnp.float32)
    xo2, ld2 = radial_flow(x2, a_param, b_param, c_param, block_b=64)
    jax.block_until_ready((xo2, ld2))
    xr2, lr2 = radial_flow_ref(x2, a_param, b_param, c_param)
    assert xo2.shape == (B2, D) and ld2.shape == (B2, 1)
    assert jnp.allclose(xo2, xr2, atol=1e-5, rtol=1e-5)
    assert jnp.allclose(ld2, lr2, atol=1e-5, rtol=1e-5)

    print("KERNEL_OK")
</pallas_src>

<mosaic_0001>
module attributes {stable_mosaic.version = 11 : i64} {
  func.func @_radial_flow_kernel(%arg0: i32, %arg1: memref<1xf32, #tpu.memory_space<smem>>, %arg2: memref<1xf32, #tpu.memory_space<smem>>, %arg3: memref<1x128xf32, #tpu.memory_space<vmem>>, %arg4: memref<256x128xf32, #tpu.memory_space<vmem>>, %arg5: memref<256x128xf32, #tpu.memory_space<vmem>>, %arg6: memref<1x1x256xf32, #tpu.memory_space<vmem>>) attributes {dimension_semantics = [#tpu.dimension_semantics<parallel>], iteration_bounds = array<i64: 1>, scalar_prefetch = 0 : i64, scratch_operands = 0 : i64, tpu.core_type = #tpu.core_type<tc>, window_params = [{transform_indices = @transform_0, window_bounds = array<i64: 1>}, {transform_indices = @transform_1, window_bounds = array<i64: 1>}, {pipeline_mode = #tpu.pipeline_mode<synchronous>, transform_indices = @transform_2, window_bounds = array<i64: 1, 128>}, {transform_indices = @transform_3, window_bounds = array<i64: 256, 128>}, {transform_indices = @transform_4, window_bounds = array<i64: 256, 128>}, {transform_indices = @transform_5, window_bounds = array<i64: 1, 1, 256>}]} {
    %c0 = arith.constant 0 : index
    %0 = memref.load %arg1[%c0] : memref<1xf32, #tpu.memory_space<smem>>
    %1 = math.exp %0 : f32
    %cst = arith.constant 0.000000e+00 : f32
    %2 = arith.subf %cst, %1 : f32
    %c0_0 = arith.constant 0 : index
    %3 = memref.load %arg2[%c0_0] : memref<1xf32, #tpu.memory_space<smem>>
    %cst_1 = arith.constant 0.000000e+00 : f32
    %4 = arith.maximumf %3, %cst_1 : f32
    %5 = arith.subf %3, %cst_1 : f32
    %6 = arith.cmpf one, %5, %5 : f32
    %7 = arith.addf %3, %cst_1 : f32
    %8 = math.absf %5 : f32
    %cst_2 = arith.constant 0.000000e+00 : f32
    %9 = arith.subf %cst_2, %8 : f32
    %10 = math.exp %9 : f32
    %11 = math.log1p %10 : f32
    %12 = arith.addf %4, %11 : f32
    %13 = arith.select %6, %7, %12 : f32
    %14 = arith.addf %2, %13 : f32
    %c0_3 = arith.constant 0 : index
    %c0_4 = arith.constant 0 : index
    %15 = vector.load %arg4[%c0_3, %c0_4] : memref<256x128xf32, #tpu.memory_space<vmem>>, vector<256x128xf32>
    %c0_5 = arith.constant 0 : index
    %c0_6 = arith.constant 0 : index
    %16 = vector.load %arg3[%c0_5, %c0_6] : memref<1x128xf32, #tpu.memory_space<vmem>>, vector<1x128xf32>
    %17 = vector.broadcast %16 : vector<1x128xf32> to vector<256x128xf32>
    %18 = arith.subf %15, %17 : vector<256x128xf32>
    %19 = arith.mulf %18, %18 : vector<256x128xf32>
    %cst_7 = arith.constant 1.000000e+00 : f32
    %20 = vector.broadcast %cst_7 : f32 to vector<8x128xf32>
    %cst_8 = arith.constant dense<0.000000e+00> : vector<8x256xf32>
    %21 = tpu.matmul %20, %19, %cst_8 {dimension_numbers = #tpu.dot_dimension_numbers<[1], [1], [0], [0], [0, 0, 1, 0], [], []>, precision = #tpu.contract_precision<fp32>} : vector<8x128xf32>, vector<256x128xf32>, vector<8x256xf32> -> vector<8x256xf32>
    %cst_9 = arith.constant dense<0.000000e+00> : vector<256xf32>
    %22 = vector.multi_reduction <add>, %19, %cst_9 [1] : vector<256x128xf32> to vector<256xf32>
    %23 = vector.shape_cast %22 : vector<256xf32> to vector<256x1xf32>
    %24 = math.sqrt %23 : vector<256x1xf32>
    %25 = vector.broadcast %1 : f32 to vector<256x1xf32>
    %26 = arith.addf %25, %24 : vector<256x1xf32>
    %27 = tpu.reciprocal %26 : vector<256x1xf32> -> vector<256x1xf32>
    %28 = vector.broadcast %14 : f32 to vector<256x1xf32>
    %29 = arith.mulf %28, %27 : vector<256x1xf32>
    %30 = vector.broadcast %29 : vector<256x1xf32> to vector<256x128xf32>
    %31 = arith.mulf %30, %18 : vector<256x128xf32>
    %32 = arith.addf %15, %31 : vector<256x128xf32>
    %c0_10 = arith.constant 0 : index
    %c0_11 = arith.constant 0 : index
    %33 = vector.load %arg5[%c0_10, %c0_11] : memref<256x128xf32, #tpu.memory_space<vmem>>, vector<256x128xf32>
    tpu.vector_store %arg5[%c0_10, %c0_11], %32 {strides = array<i32>} : memref<256x128xf32, #tpu.memory_space<vmem>>, vector<256x128xf32>,
    %34 = math.sqrt %21 : vector<8x256xf32>
    %35 = vector.broadcast %1 : f32 to vector<8x256xf32>
    %36 = arith.addf %35, %34 : vector<8x256xf32>
    %37 = tpu.reciprocal %36 : vector<8x256xf32> -> vector<8x256xf32>
    %38 = vector.broadcast %14 : f32 to vector<8x256xf32>
    %39 = arith.mulf %38, %37 : vector<8x256xf32>
    %cst_12 = arith.constant 1.000000e+00 : f32
    %40 = vector.broadcast %cst_12 : f32 to vector<8x256xf32>
    %41 = arith.addf %40, %39 : vector<8x256xf32>
    %42 = math.log %41 : vector<8x256xf32>
    %cst_13 = arith.constant 1.270000e+02 : f32
    %43 = vector.broadcast %cst_13 : f32 to vector<8x256xf32>
    %44 = arith.mulf %43, %42 : vector<8x256xf32>
    %45 = arith.mulf %1, %14 : f32
    %46 = vector.broadcast %45 : f32 to vector<8x256xf32>
    %47 = arith.mulf %46, %37 : vector<8x256xf32>
    %48 = arith.mulf %47, %37 : vector<8x256xf32>
    %cst_14 = arith.constant 1.000000e+00 : f32
    %49 = vector.broadcast %cst_14 : f32 to vector<8x256xf32>
    %50 = arith.addf %49, %48 : vector<8x256xf32>
    %51 = math.log %50 : vector<8x256xf32>
    %52 = arith.addf %44, %51 : vector<8x256xf32>
    %53 = vector.extract_strided_slice %52 {offsets = [0, 0], sizes = [1, 256], strides = [1, 1]} : vector<8x256xf32> to vector<1x256xf32>
    %c0_15 = arith.constant 0 : index
    %c0_16 = arith.constant 0 : index
    %c0_17 = arith.constant 0 : index
    %54 = vector.load %arg6[%c0_15, %c0_16, %c0_17] : memref<1x1x256xf32, #tpu.memory_space<vmem>>, vector<1x1x256xf32>
    %55 = vector.shape_cast %54 : vector<1x1x256xf32> to vector<1x256xf32>
    %56 = vector.shape_cast %53 : vector<1x256xf32> to vector<1x1x256xf32>
    tpu.vector_store %arg6[%c0_15, %c0_16, %c0_17], %56 {strides = array<i32>} : memref<1x1x256xf32, #tpu.memory_space<vmem>>, vector<1x1x256xf32>,
    return
  }
  func.func @transform_0(%arg0: i32) -> i32 {
    %c0_i32 = arith.constant 0 : i32
    %c0_i32_0 = arith.constant 0 : i32
    return %c0_i32 : i32
  }
  func.func @transform_1(%arg0: i32) -> i32 {
    %c0_i32 = arith.constant 0 : i32
    %c0_i32_0 = arith.constant 0 : i32
    return %c0_i32 : i32
  }
  func.func @transform_2(%arg0: i32) -> (i32, i32) {
    %c0_i32 = arith.constant 0 : i32
    %c0_i32_0 = arith.constant 0 : i32
    %c0_i32_1 = arith.constant 0 : i32
    return %c0_i32, %c0_i32_0 : i32, i32
  }
  func.func @transform_3(%arg0: i32) -> (i32, i32) {
    %c0_i32 = arith.constant 0 : i32
    %c0_i32_0 = arith.constant 0 : i32
    return %arg0, %c0_i32 : i32, i32
  }
  func.func @transform_4(%arg0: i32) -> (i32, i32) {
    %c0_i32 = arith.constant 0 : i32
    %c0_i32_0 = arith.constant 0 : i32
    return %arg0, %c0_i32 : i32, i32
  }
  func.func @transform_5(%arg0: i32) -> (i32, i32, i32) {
    %c0_i32 = arith.constant 0 : i32
    %c0_i32_0 = arith.constant 0 : i32
    %c0_i32_1 = arith.constant 0 : i32
    return %arg0, %c0_i32, %c0_i32_0 : i32, i32, i32
  }
}

</mosaic_0001>

<llo_original>
// kernel: tpu_custom_call.1
$region0: #{tpu_custom_call.1}
  #allocation0 [shape = 'u32[]', space=smem, size = 0x4, offset = 0x4, fixed_abs, tag = 'smem constant byte address 0x4 - core index']
  #allocation1 [shape = 'u32[144,128]{1,0:T(1,128)}', space=vmem, size = 0x12000, scoped, tag = 'internal scratch']
  #allocation2 [shape = 'f32[1]{0:T(128)S(6)}', space=smem, size = 0x200, scoped, tag = 'scoped memory for tpu_custom_call.1']
  #allocation3 [shape = 'f32[1]{0:T(128)S(6)}', space=smem, size = 0x200, scoped, tag = 'scoped memory for tpu_custom_call.1']
  %s0 = inlined_call_operand.<no memory space> [shape: f32[1], index: 0, kind: input, shape index: {}]
  %s1 = inlined_call_operand.<no memory space> [shape: f32[1], index: 1, kind: input, shape index: {}]
  %s2 = inlined_call_operand.vmem [shape: f32[1,128], index: 2, kind: input, shape index: {}]
  %s3 = inlined_call_operand.hbm [shape: f32[256,128], index: 3, kind: input, shape index: {}]
  %s4 = inlined_call_operand.hbm [shape: f32[256,128], index: 4, kind: output, shape index: {0}]
  %s5 = inlined_call_operand.hbm [shape: f32[1,1,256], index: 5, kind: output, shape index: {1}]
  %6 = xla_tuple %s4, %s5
  %s7 = sld [smem:[#allocation0]]
  $region38: #{tpu_custom_call.1} parent=0
    _
  %s9 = ssub.s32 1, %s7
  %s10 = scalar_select 0, %s9, %s7
  %11 = sst [smem:[#allocation2]] %s0
  %12 = sst [smem:[#allocation3]] %s1
  $region1: #{tpu_custom_call.1} parent=0
    #allocation4 [shape = 'u8[131072]{0}', space=vmem, size = 0x20000, scoped, tag = 'input window, operand 3, single buffered']
    #allocation5 [shape = 's32[1]{0}', space=sflag, size = 0x4, scoped, tag = 'scoped memory for tpu_custom_call.1']
    #allocation6 [shape = 's32[1]{0}', space=sflag, size = 0x4, scoped, tag = 'scoped memory for tpu_custom_call.1']
    #allocation7 [shape = 'u8[131072]{0}', space=vmem, size = 0x20000, scoped, tag = 'output window, operand 0, single buffered']
    #allocation8 [shape = 'u8[1024]{0}', space=vmem, size = 0x400, scoped, tag = 'output window, operand 1, single buffered']
    #allocation9 [shape = 's32[1]{0}', space=sflag, size = 0x4, scoped, tag = 'scoped memory for tpu_custom_call.1']
    %13 = vsyncpa [#allocation5], 0
    %14 = vsyncpa [#allocation6], 0
    %15 = vsyncpa [#allocation9], 0
    // Predicated region
    $region2: #{tpu_custom_call.1} parent=1 // pred_check
      _
    $region3: #{tpu_custom_call.1} parent=1 // pred_check_branch
      %17 = sbr.rel (0) target = $region5
    $region4: #{tpu_custom_call.1} parent=1 // pred_region
      _
    $region5: #{tpu_custom_call.1} parent=1 // pred_fallthru
      _
    // Predicated region
    $region6: #{tpu_custom_call.1} parent=1 // pred_check
      _
    $region7: #{tpu_custom_call.1} parent=1 // pred_check_branch
      %19 = sbr.rel (0) target = $region9
    $region8: #{tpu_custom_call.1} parent=1 // pred_region
      _
    $region9: #{tpu_custom_call.1} parent=1 // pred_fallthru
      _
    // Predicated region
    $region10: #{tpu_custom_call.1} parent=1 // pred_check
      _
    $region11: #{tpu_custom_call.1} parent=1 // pred_check_branch
      %21 = sbr.rel (0) target = $region13
    $region12: #{tpu_custom_call.1} parent=1 // pred_region
      _
    $region13: #{tpu_custom_call.1} parent=1 // pred_fallthru
      _
    // Predicated region
    $region14: #{tpu_custom_call.1} parent=1 // pred_check
      _
    $region15: #{tpu_custom_call.1} parent=1 // pred_check_branch
      %23 = sbr.rel (0) target = $region17
    $region16: #{tpu_custom_call.1} parent=1 // pred_region
      %s25 = ssub.s32 4096, 4096
      %26 = vsyncadd [#allocation5], %s25
      %s27 = sshll.u32 [#allocation4], 4
      %s28 = int_to_ptr.vmem [resolvable:$true] %s27
      %33 = dma.hbm_to_vmem [thread:$0]  %s3, 4096, %s28, [#allocation5], 128, 128, 8
    $region17: #{tpu_custom_call.1} parent=1 // pred_fallthru
      _
    // Predicated region
    $region18: #{tpu_custom_call.1} parent=1 // pred_check
      _
    $region19: #{tpu_custom_call.1} parent=1 // pred_check_branch
      %35 = sbr.rel (0) target = $region21
    $region20: #{tpu_custom_call.1} parent=1 // pred_region
      %36 = dma.done [#allocation5], 4096
    $region21: #{tpu_custom_call.1} parent=1 // pred_fallthru
      _
    %s37 = sld [smem:[#allocation2]]
    %v38 = vstv %s37
    %v39 = vmul.f32 %v38, 1.442695
    %v40 = vpow.pop %v39
    %s41 = vtos %v40
    %s42 = ssub.f32 0.0, %s41
    %s43 = sld [smem:[#allocation3]]
    %s44 = smax.f32 %s43, 0.0
    %p45 = scmp.ne.f32.partialorder %s43, %s43
    %s46 = sadd.f32 %s43, 0.0
    %s47 = sand.u32 2147483647, %s43
    %s48 = ssub.f32 0.0, %s47
    %v49 = vstv %s48
    %v50 = vmul.f32 %v49, 1.442695
    %v51 = vpow.pop %v50
    %s52 = vtos %v51
    %v53 = vstv %s52
    %v54 = vadd.f32 %v53, 1.0
    %v55 = vlog2.pop %v54
    %v56 = vmul.f32 %v55, 0.6931472
    %v57 = vmul.f32 -0.5, %v53
    %v58 = vadd.f32 %v57, 1.0
    %v59 = vmul.f32 %v58, %v53
    %v60 = vand.u32 2147483647, %v53
    %vm61 = vcmp.lt.f32.partialorder %v60, 0.0004427343
    %v62 = vsel %vm61, %v59, %v56
    %s63 = vtos %v62
    %s64 = sadd.f32 %s44, %s63
    %s65 = scalar_select %p45, %s46, %s64
    %s66 = sadd.f32 %s42, %s65
    %v67 = vld [vmem:[#allocation4] sm:$0xff]
    %v68 = vld [vmem:[#allocation4 + $0x8] sm:$0xff]
    %v69 = vld [vmem:[#allocation4 + $0x10] sm:$0xff]
    %v70 = vld [vmem:[#allocation4 + $0x18] sm:$0xff]
    %v71 = vld [vmem:[#allocation4 + $0x20] sm:$0xff]
    %v72 = vld [vmem:[#allocation4 + $0x28] sm:$0xff]
    %v73 = vld [vmem:[#allocation4 + $0x30] sm:$0xff]
    %v74 = vld [vmem:[#allocation4 + $0x38] sm:$0xff]
    %v75 = vld [vmem:[#allocation4 + $0x40] sm:$0xff]
    %v76 = vld [vmem:[#allocation4 + $0x48] sm:$0xff]
    %v77 = vld [vmem:[#allocation4 + $0x50] sm:$0xff]
    %v78 = vld [vmem:[#allocation4 + $0x58] sm:$0xff]
    %v79 = vld [vmem:[#allocation4 + $0x60] sm:$0xff]
    %v80 = vld [vmem:[#allocation4 + $0x68] sm:$0xff]
    %v81 = vld [vmem:[#allocation4 + $0x70] sm:$0xff]
    %v82 = vld [vmem:[#allocation4 + $0x78] sm:$0xff]
    %v83 = vld [vmem:[#allocation4 + $0x80] sm:$0xff]
    %v84 = vld [vmem:[#allocation4 + $0x88] sm:$0xff]
    %v85 = vld [vmem:[#allocation4 + $0x90] sm:$0xff]
    %v86 = vld [vmem:[#allocation4 + $0x98] sm:$0xff]
    %v87 = vld [vmem:[#allocation4 + $0xa0] sm:$0xff]
    %v88 = vld [vmem:[#allocation4 + $0xa8] sm:$0xff]
    %v89 = vld [vmem:[#allocation4 + $0xb0] sm:$0xff]
    %v90 = vld [vmem:[#allocation4 + $0xb8] sm:$0xff]
    %v91 = vld [vmem:[#allocation4 + $0xc0] sm:$0xff]
    %v92 = vld [vmem:[#allocation4 + $0xc8] sm:$0xff]
    %v93 = vld [vmem:[#allocation4 + $0xd0] sm:$0xff]
    %v94 = vld [vmem:[#allocation4 + $0xd8] sm:$0xff]
    %v95 = vld [vmem:[#allocation4 + $0xe0] sm:$0xff]
    %v96 = vld [vmem:[#allocation4 + $0xe8] sm:$0xff]
    %v97 = vld [vmem:[#allocation4 + $0xf0] sm:$0xff]
    %v98 = vld [vmem:[#allocation4 + $0xf8] sm:$0xff]
    %v99 = vld [vmem:[%s2] sm:$0x1]
    %v101 = vlaneseq
    %v102 = vshrl.u32 %v101, 7
    %v103 = vsub.s32 0, %v102
    %v104 = vrot.slane %v99, %v103
    %v106 = vsub.f32 %v67, %v104
    %v107 = vsub.f32 %v68, %v104
    %v108 = vsub.f32 %v69, %v104
    %v109 = vsub.f32 %v70, %v104
    %v110 = vsub.f32 %v71, %v104
    %v111 = vsub.f32 %v72, %v104
    %v112 = vsub.f32 %v73, %v104
    %v113 = vsub.f32 %v74, %v104
    %v114 = vsub.f32 %v75, %v104
    %v115 = vsub.f32 %v76, %v104
    %v116 = vsub.f32 %v77, %v104
    %v117 = vsub.f32 %v78, %v104
    %v118 = vsub.f32 %v79, %v104
    %v119 = vsub.f32 %v80, %v104
    %v120 = vsub.f32 %v81, %v104
    %v121 = vsub.f32 %v82, %v104
    %v122 = vsub.f32 %v83, %v104
    %v123 = vsub.f32 %v84, %v104
    %v124 = vsub.f32 %v85, %v104
    %v125 = vsub.f32 %v86, %v104
    %v126 = vsub.f32 %v87, %v104
    %v127 = vsub.f32 %v88, %v104
    %v128 = vsub.f32 %v89, %v104
    %v129 = vsub.f32 %v90, %v104
    %v130 = vsub.f32 %v91, %v104
    %v131 = vsub.f32 %v92, %v104
    %v132 = vsub.f32 %v93, %v104
    %v133 = vsub.f32 %v94, %v104
    %v134 = vsub.f32 %v95, %v104
    %v135 = vsub.f32 %v96, %v104
    %v136 = vsub.f32 %v97, %v104
    %v137 = vsub.f32 %v98, %v104
    %v138 = vmul.f32 %v106, %v106
    %v139 = vmul.f32 %v107, %v107
    %v140 = vmul.f32 %v108, %v108
    %v141 = vmul.f32 %v109, %v109
    %v142 = vmul.f32 %v110, %v110
    %v143 = vmul.f32 %v111, %v111
    %v144 = vmul.f32 %v112, %v112
    %v145 = vmul.f32 %v113, %v113
    %v146 = vmul.f32 %v114, %v114
    %v147 = vmul.f32 %v115, %v115
    %v148 = vmul.f32 %v116, %v116
    %v149 = vmul.f32 %v117, %v117
    %v150 = vmul.f32 %v118, %v118
    %v151 = vmul.f32 %v119, %v119
    %v152 = vmul.f32 %v120, %v120
    %v153 = vmul.f32 %v121, %v121
    %v154 = vmul.f32 %v122, %v122
    %v155 = vmul.f32 %v123, %v123
    %v156 = vmul.f32 %v124, %v124
    %v157 = vmul.f32 %v125, %v125
    %v158 = vmul.f32 %v126, %v126
    %v159 = vmul.f32 %v127, %v127
    %v160 = vmul.f32 %v128, %v128
    %v161 = vmul.f32 %v129, %v129
    %v162 = vmul.f32 %v130, %v130
    %v163 = vmul.f32 %v131, %v131
    %v164 = vmul.f32 %v132, %v132
    %v165 = vmul.f32 %v133, %v133
    %v166 = vmul.f32 %v134, %v134
    %v167 = vmul.f32 %v135, %v135
    %v168 = vmul.f32 %v136, %v136
    %v169 = vmul.f32 %v137, %v137
    %170 = vmatprep.subr.mxu0 0.0
    %v171 = vand.u32 %v138, 4294901760
    %172 = vmatpush1.xpose.msra.mxu0 %v171
    %173 = vmatprep.subr.mxu0 0.0
    %v174 = vand.u32 %v139, 4294901760
    %175 = vmatpush1.xpose.msra.mxu0 %v174
    %176 = vmatprep.subr.mxu0 0.0
    %v177 = vand.u32 %v140, 4294901760
    %178 = vmatpush1.xpose.msra.mxu0 %v177
    %179 = vmatprep.subr.mxu0 0.0
    %v180 = vand.u32 %v141, 4294901760
    %181 = vmatpush1.xpose.msra.mxu0 %v180
    %182 = vmatprep.subr.mxu0 0.0
    %v183 = vand.u32 %v142, 4294901760
    %184 = vmatpush1.xpose.msra.mxu0 %v183
    %185 = vmatprep.subr.mxu0 0.0
    %v186 = vand.u32 %v143, 4294901760
    %187 = vmatpush1.xpose.msra.mxu0 %v186
    %188 = vmatprep.subr.mxu0 0.0
    %v189 = vand.u32 %v144, 4294901760
    %190 = vmatpush1.xpose.msra.mxu0 %v189
    %191 = vmatprep.subr.mxu0 0.0
    %v192 = vand.u32 %v145, 4294901760
    %193 = vmatpush1.xpose.msra.mxu0 %v192
    %194 = vmatprep.subr.mxu0 0.0
    %v195 = vand.u32 %v146, 4294901760
    %196 = vmatpush1.xpose.msra.mxu0 %v195
    %197 = vmatprep.subr.mxu0 0.0
    %v198 = vand.u32 %v147, 4294901760
    %199 = vmatpush1.xpose.msra.mxu0 %v198
    %200 = vmatprep.subr.mxu0 0.0
    %v201 = vand.u32 %v148, 4294901760
    %202 = vmatpush1.xpose.msra.mxu0 %v201
    %203 = vmatprep.subr.mxu0 0.0
    %v204 = vand.u32 %v149, 4294901760
    %205 = vmatpush1.xpose.msra.mxu0 %v204
    %206 = vmatprep.subr.mxu0 0.0
    %v207 = vand.u32 %v150, 4294901760
    %208 = vmatpush1.xpose.msra.mxu0 %v207
    %209 = vmatprep.subr.mxu0 0.0
    %v210 = vand.u32 %v151, 4294901760
    %211 = vmatpush1.xpose.msra.mxu0 %v210
    %212 = vmatprep.subr.mxu0 0.0
    %v213 = vand.u32 %v152, 4294901760
    %214 = vmatpush1.xpose.msra.mxu0 %v213
    %215 = vmatprep.subr.mxu0 0.0
    %v216 = vand.u32 %v153, 4294901760
    %217 = vmatpush1.xpose.msra.mxu0 %v216
    %218 = vmatprep.subr.mxu0 0.0
    %v219 = vand.u32 %v154, 4294901760
    %220 = vmatpush1.xpose.msra.mxu0 %v219
    %221 = vmatprep.subr.mxu0 0.0
    %v222 = vand.u32 %v155, 4294901760
    %223 = vmatpush1.xpose.msra.mxu0 %v222
    %224 = vmatprep.subr.mxu0 0.0
    %v225 = vand.u32 %v156, 4294901760
    %226 = vmatpush1.xpose.msra.mxu0 %v225
    %227 = vmatprep.subr.mxu0 0.0
    %v228 = vand.u32 %v157, 4294901760
    %229 = vmatpush1.xpose.msra.mxu0 %v228
    %230 = vmatprep.subr.mxu0 0.0
    %v231 = vand.u32 %v158, 4294901760
    %232 = vmatpush1.xpose.msra.mxu0 %v231
    %233 = vmatprep.subr.mxu0 0.0
    %v234 = vand.u32 %v159, 4294901760
    %235 = vmatpush1.xpose.msra.mxu0 %v234
    %236 = vmatprep.subr.mxu0 0.0
    %v237 = vand.u32 %v160, 4294901760
    %238 = vmatpush1.xpose.msra.mxu0 %v237
    %239 = vmatprep.subr.mxu0 0.0
    %v240 = vand.u32 %v161, 4294901760
    %241 = vmatpush1.xpose.msra.mxu0 %v240
    %242 = vmatprep.subr.mxu0 0.0
    %v243 = vand.u32 %v162, 4294901760
    %244 = vmatpush1.xpose.msra.mxu0 %v243
    %245 = vmatprep.subr.mxu0 0.0
    %v246 = vand.u32 %v163, 4294901760
    %247 = vmatpush1.xpose.msra.mxu0 %v246
    %248 = vmatprep.subr.mxu0 0.0
    %v249 = vand.u32 %v164, 4294901760
    %250 = vmatpush1.xpose.msra.mxu0 %v249
    %251 = vmatprep.subr.mxu0 0.0
    %v252 = vand.u32 %v165, 4294901760
    %253 = vmatpush1.xpose.msra.mxu0 %v252
    %254 = vmatprep.subr.mxu0 0.0
    %v255 = vand.u32 %v166, 4294901760
    %256 = vmatpush1.xpose.msra.mxu0 %v255
    %257 = vmatprep.subr.mxu0 0.0
    %v258 = vand.u32 %v167, 4294901760
    %259 = vmatpush1.xpose.msra.mxu0 %v258
    %260 = vmatprep.subr.mxu0 0.0
    %v261 = vand.u32 %v168, 4294901760
    %262 = vmatpush1.xpose.msra.mxu0 %v261
    %263 = vmatprep.subr.mxu0 0.0
    %v264 = vand.u32 %v169, 4294901760
    %265 = vmatpush1.xpose.msra.mxu0 %v264
    %266 = vmatprep.mubr.f32.mxu0 0.0
    %267 = vmatmul.mubr.f32.gmra.mrb[0].mxu0 0.0
    %v268 = vpop.f32.mrb[0].mxu0
    %v269 = vadd.f32 0.0, %v268
    %v270 = vpop.f32.mrb[0].mxu0
    %v271 = vadd.f32 0.0, %v270
    %272 = vdwg.mxu0
    %273 = vmatprep.subr.mxu0 0.0
    %v274 = vand.u32 %v138, 4294901760
    %v275 = vsub.f32 %v138, %v274
    %v276 = vand.u32 %v275, 4294901760
    %v277 = vsub.f32 %v275, %v276
    %v278 = vand.u32 %v277, 4294901760
    %279 = vmatpush1.xpose.msra.mxu0 %v278
    %280 = vmatprep.subr.mxu0 0.0
    %v281 = vand.u32 %v139, 4294901760
    %v282 = vsub.f32 %v139, %v281
    %v283 = vand.u32 %v282, 4294901760
    %v284 = vsub.f32 %v282, %v283
    %v285 = vand.u32 %v284, 4294901760
    %286 = vmatpush1.xpose.msra.mxu0 %v285
    %287 = vmatprep.subr.mxu0 0.0
    %v288 = vand.u32 %v140, 4294901760
    %v289 = vsub.f32 %v140, %v288
    %v290 = vand.u32 %v289, 4294901760
    %v291 = vsub.f32 %v289, %v290
    %v292 = vand.u32 %v291, 4294901760
    %293 = vmatpush1.xpose.msra.mxu0 %v292
    %294 = vmatprep.subr.mxu0 0.0
    %v295 = vand.u32 %v141, 4294901760
    %v296 = vsub.f32 %v141, %v295
    %v297 = vand.u32 %v296, 4294901760
    %v298 = vsub.f32 %v296, %v297
    %v299 = vand.u32 %v298, 4294901760
    %300 = vmatpush1.xpose.msra.mxu0 %v299
    %301 = vmatprep.subr.mxu0 0.0
    %v302 = vand.u32 %v142, 4294901760
    %v303 = vsub.f32 %v142, %v302
    %v304 = vand.u32 %v303, 4294901760
    %v305 = vsub.f32 %v303, %v304
    %v306 = vand.u32 %v305, 4294901760
    %307 = vmatpush1.xpose.msra.mxu0 %v306
    %308 = vmatprep.subr.mxu0 0.0
    %v309 = vand.u32 %v143, 4294901760
    %v310 = vsub.f32 %v143, %v309
    %v311 = vand.u32 %v310, 4294901760
    %v312 = vsub.f32 %v310, %v311
    %v313 = vand.u32 %v312, 4294901760
    %314 = vmatpush1.xpose.msra.mxu0 %v313
    %315 = vmatprep.subr.mxu0 0.0
    %v316 = vand.u32 %v144, 4294901760
    %v317 = vsub.f32 %v144, %v316
    %v318 = vand.u32 %v317, 4294901760
    %v319 = vsub.f32 %v317, %v318
    %v320 = vand.u32 %v319, 4294901760
    %321 = vmatpush1.xpose.msra.mxu0 %v320
    %322 = vmatprep.subr.mxu0 0.0
    %v323 = vand.u32 %v145, 4294901760
    %v324 = vsub.f32 %v145, %v323
    %v325 = vand.u32 %v324, 4294901760
    %v326 = vsub.f32 %v324, %v325
    %v327 = vand.u32 %v326, 4294901760
    %328 = vmatpush1.xpose.msra.mxu0 %v327
    %329 = vmatprep.subr.mxu0 0.0
    %v330 = vand.u32 %v146, 4294901760
    %v331 = vsub.f32 %v146, %v330
    %v332 = vand.u32 %v331, 4294901760
    %v333 = vsub.f32 %v331, %v332
    %v334 = vand.u32 %v333, 4294901760
    %335 = vmatpush1.xpose.msra.mxu0 %v334
    %336 = vmatprep.subr.mxu0 0.0
    %v337 = vand.u32 %v147, 4294901760
    %v338 = vsub.f32 %v147, %v337
    %v339 = vand.u32 %v338, 4294901760
    %v340 = vsub.f32 %v338, %v339
    %v341 = vand.u32 %v340, 4294901760
    %342 = vmatpush1.xpose.msra.mxu0 %v341
    %343 = vmatprep.subr.mxu0 0.0
    %v344 = vand.u32 %v148, 4294901760
    %v345 = vsub.f32 %v148, %v344
    %v346 = vand.u32 %v345, 4294901760
    %v347 = vsub.f32 %v345, %v346
    %v348 = vand.u32 %v347, 4294901760
    %349 = vmatpush1.xpose.msra.mxu0 %v348
    %350 = vmatprep.subr.mxu0 0.0
    %v351 = vand.u32 %v149, 4294901760
    %v352 = vsub.f32 %v149, %v351
    %v353 = vand.u32 %v352, 4294901760
    %v354 = vsub.f32 %v352, %v353
    %v355 = vand.u32 %v354, 4294901760
    %356 = vmatpush1.xpose.msra.mxu0 %v355
    %357 = vmatprep.subr.mxu0 0.0
    %v358 = vand.u32 %v150, 4294901760
    %v359 = vsub.f32 %v150, %v358
    %v360 = vand.u32 %v359, 4294901760
    %v361 = vsub.f32 %v359, %v360
    %v362 = vand.u32 %v361, 4294901760
    %363 = vmatpush1.xpose.msra.mxu0 %v362
    %364 = vmatprep.subr.mxu0 0.0
    %v365 = vand.u32 %v151, 4294901760
    %v366 = vsub.f32 %v151, %v365
    %v367 = vand.u32 %v366, 4294901760
    %v368 = vsub.f32 %v366, %v367
    %v369 = vand.u32 %v368, 4294901760
    %370 = vmatpush1.xpose.msra.mxu0 %v369
    %371 = vmatprep.subr.mxu0 0.0
    %v372 = vand.u32 %v152, 4294901760
    %v373 = vsub.f32 %v152, %v372
    %v374 = vand.u32 %v373, 4294901760
    %v375 = vsub.f32 %v373, %v374
    %v376 = vand.u32 %v375, 4294901760
    %377 = vmatpush1.xpose.msra.mxu0 %v376
    %378 = vmatprep.subr.mxu0 0.0
    %v379 = vand.u32 %v153, 4294901760
    %v380 = vsub.f32 %v153, %v379
    %v381 = vand.u32 %v380, 4294901760
    %v382 = vsub.f32 %v380, %v381
    %v383 = vand.u32 %v382, 4294901760
    %384 = vmatpush1.xpose.msra.mxu0 %v383
    %385 = vmatprep.subr.mxu0 0.0
    %v386 = vand.u32 %v154, 4294901760
    %v387 = vsub.f32 %v154, %v386
    %v388 = vand.u32 %v387, 4294901760
    %v389 = vsub.f32 %v387, %v388
    %v390 = vand.u32 %v389, 4294901760
    %391 = vmatpush1.xpose.msra.mxu0 %v390
    %392 = vmatprep.subr.mxu0 0.0
    %v393 = vand.u32 %v155, 4294901760
    %v394 = vsub.f32 %v155, %v393
    %v395 = vand.u32 %v394, 4294901760
    %v396 = vsub.f32 %v394, %v395
    %v397 = vand.u32 %v396, 4294901760
    %398 = vmatpush1.xpose.msra.mxu0 %v397
    %399 = vmatprep.subr.mxu0 0.0
    %v400 = vand.u32 %v156, 4294901760
    %v401 = vsub.f32 %v156, %v400
    %v402 = vand.u32 %v401, 4294901760
    %v403 = vsub.f32 %v401, %v402
    %v404 = vand.u32 %v403, 4294901760
    %405 = vmatpush1.xpose.msra.mxu0 %v404
    %406 = vmatprep.subr.mxu0 0.0
    %v407 = vand.u32 %v157, 4294901760
    %v408 = vsub.f32 %v157, %v407
    %v409 = vand.u32 %v408, 4294901760
    %v410 = vsub.f32 %v408, %v409
    %v411 = vand.u32 %v410, 4294901760
    %412 = vmatpush1.xpose.msra.mxu0 %v411
    %413 = vmatprep.subr.mxu0 0.0
    %v414 = vand.u32 %v158, 4294901760
    %v415 = vsub.f32 %v158, %v414
    %v416 = vand.u32 %v415, 4294901760
    %v417 = vsub.f32 %v415, %v416
    %v418 = vand.u32 %v417, 4294901760
    %419 = vmatpush1.xpose.msra.mxu0 %v418
    %420 = vmatprep.subr.mxu0 0.0
    %v421 = vand.u32 %v159, 4294901760
    %v422 = vsub.f32 %v159, %v421
    %v423 = vand.u32 %v422, 4294901760
    %v424 = vsub.f32 %v422, %v423
    %v425 = vand.u32 %v424, 4294901760
    %426 = vmatpush1.xpose.msra.mxu0 %v425
    %427 = vmatprep.subr.mxu0 0.0
    %v428 = vand.u32 %v160, 4294901760
    %v429 = vsub.f32 %v160, %v428
    %v430 = vand.u32 %v429, 4294901760
    %v431 = vsub.f32 %v429, %v430
    %v432 = vand.u32 %v431, 4294901760
    %433 = vmatpush1.xpose.msra.mxu0 %v432
    %434 = vmatprep.subr.mxu0 0.0
    %v435 = vand.u32 %v161, 4294901760
    %v436 = vsub.f32 %v161, %v435
    %v437 = vand.u32 %v436, 4294901760
    %v438 = vsub.f32 %v436, %v437
    %v439 = vand.u32 %v438, 4294901760
    %440 = vmatpush1.xpose.msra.mxu0 %v439
    %441 = vmatprep.subr.mxu0 0.0
    %v442 = vand.u32 %v162, 4294901760
    %v443 = vsub.f32 %v162, %v442
    %v444 = vand.u32 %v443, 4294901760
    %v445 = vsub.f32 %v443, %v444
    %v446 = vand.u32 %v445, 4294901760
    %447 = vmatpush1.xpose.msra.mxu0 %v446
    %448 = vmatprep.subr.mxu0 0.0
    %v449 = vand.u32 %v163, 4294901760
    %v450 = vsub.f32 %v163, %v449
    %v451 = vand.u32 %v450, 4294901760
    %v452 = vsub.f32 %v450, %v451
    %v453 = vand.u32 %v452, 4294901760
    %454 = vmatpush1.xpose.msra.mxu0 %v453
    %455 = vmatprep.subr.mxu0 0.0
    %v456 = vand.u32 %v164, 4294901760
    %v457 = vsub.f32 %v164, %v456
    %v458 = vand.u32 %v457, 4294901760
    %v459 = vsub.f32 %v457, %v458
    %v460 = vand.u32 %v459, 4294901760
    %461 = vmatpush1.xpose.msra.mxu0 %v460
    %462 = vmatprep.subr.mxu0 0.0
    %v463 = vand.u32 %v165, 4294901760
    %v464 = vsub.f32 %v165, %v463
    %v465 = vand.u32 %v464, 4294901760
    %v466 = vsub.f32 %v464, %v465
    %v467 = vand.u32 %v466, 4294901760
    %468 = vmatpush1.xpose.msra.mxu0 %v467
    %469 = vmatprep.subr.mxu0 0.0
    %v470 = vand.u32 %v166, 4294901760
    %v471 = vsub.f32 %v166, %v470
    %v472 = vand.u32 %v471, 4294901760
    %v473 = vsub.f32 %v471, %v472
    %v474 = vand.u32 %v473, 4294901760
    %475 = vmatpush1.xpose.msra.mxu0 %v474
    %476 = vmatprep.subr.mxu0 0.0
    %v477 = vand.u32 %v167, 4294901760
    %v478 = vsub.f32 %v167, %v477
    %v479 = vand.u32 %v478, 4294901760
    %v480 = vsub.f32 %v478, %v479
    %v481 = vand.u32 %v480, 4294901760
    %482 = vmatpush1.xpose.msra.mxu0 %v481
    %483 = vmatprep.subr.mxu0 0.0
    %v484 = vand.u32 %v168, 4294901760
    %v485 = vsub.f32 %v168, %v484
    %v486 = vand.u32 %v485, 4294901760
    %v487 = vsub.f32 %v485, %v486
    %v488 = vand.u32 %v487, 4294901760
    %489 = vmatpush1.xpose.msra.mxu0 %v488
    %490 = vmatprep.subr.mxu0 0.0
    %v491 = vand.u32 %v169, 4294901760
    %v492 = vsub.f32 %v169, %v491
    %v493 = vand.u32 %v492, 4294901760
    %v494 = vsub.f32 %v492, %v493
    %v495 = vand.u32 %v494, 4294901760
    %496 = vmatpush1.xpose.msra.mxu0 %v495
    %497 = vmatprep.mubr.f32.mxu0 0.0
    %498 = vmatmul.mubr.f32.gmra.mrb[0].mxu0 1.0
    %v499 = vpop.f32.mrb[0].mxu0
    %v500 = vadd.f32 %v269, %v499
    %v501 = vpop.f32.mrb[0].mxu0
    %v502 = vadd.f32 %v271, %v501
    %503 = vdwg.mxu0
    %504 = vmatprep.subr.mxu0 0.0
    %v505 = vand.u32 %v138, 4294901760
    %v506 = vsub.f32 %v138, %v505
    %507 = vmatpush1.xpose.msra.mxu0 %v506
    %508 = vmatprep.subr.mxu0 0.0
    %v509 = vand.u32 %v139, 4294901760
    %v510 = vsub.f32 %v139, %v509
    %511 = vmatpush1.xpose.msra.mxu0 %v510
    %512 = vmatprep.subr.mxu0 0.0
    %v513 = vand.u32 %v140, 4294901760
    %v514 = vsub.f32 %v140, %v513
    %515 = vmatpush1.xpose.msra.mxu0 %v514
    %516 = vmatprep.subr.mxu0 0.0
    %v517 = vand.u32 %v141, 4294901760
    %v518 = vsub.f32 %v141, %v517
    %519 = vmatpush1.xpose.msra.mxu0 %v518
    %520 = vmatprep.subr.mxu0 0.0
    %v521 = vand.u32 %v142, 4294901760
    %v522 = vsub.f32 %v142, %v521
    %523 = vmatpush1.xpose.msra.mxu0 %v522
    %524 = vmatprep.subr.mxu0 0.0
    %v525 = vand.u32 %v143, 4294901760
    %v526 = vsub.f32 %v143, %v525
    %527 = vmatpush1.xpose.msra.mxu0 %v526
    %528 = vmatprep.subr.mxu0 0.0
    %v529 = vand.u32 %v144, 4294901760
    %v530 = vsub.f32 %v144, %v529
    %531 = vmatpush1.xpose.msra.mxu0 %v530
    %532 = vmatprep.subr.mxu0 0.0
    %v533 = vand.u32 %v145, 4294901760
    %v534 = vsub.f32 %v145, %v533
    %535 = vmatpush1.xpose.msra.mxu0 %v534
    %536 = vmatprep.subr.mxu0 0.0
    %v537 = vand.u32 %v146, 4294901760
    %v538 = vsub.f32 %v146, %v537
    %539 = vmatpush1.xpose.msra.mxu0 %v538
    %540 = vmatprep.subr.mxu0 0.0
    %v541 = vand.u32 %v147, 4294901760
    %v542 = vsub.f32 %v147, %v541
    %543 = vmatpush1.xpose.msra.mxu0 %v542
    %544 = vmatprep.subr.mxu0 0.0
    %v545 = vand.u32 %v148, 4294901760
    %v546 = vsub.f32 %v148, %v545
    %547 = vmatpush1.xpose.msra.mxu0 %v546
    %548 = vmatprep.subr.mxu0 0.0
    %v549 = vand.u32 %v149, 4294901760
    %v550 = vsub.f32 %v149, %v549
    %551 = vmatpush1.xpose.msra.mxu0 %v550
    %552 = vmatprep.subr.mxu0 0.0
    %v553 = vand.u32 %v150, 4294901760
    %v554 = vsub.f32 %v150, %v553
    %555 = vmatpush1.xpose.msra.mxu0 %v554
    %556 = vmatprep.subr.mxu0 0.0
    %v557 = vand.u32 %v151, 4294901760
    %v558 = vsub.f32 %v151, %v557
    %559 = vmatpush1.xpose.msra.mxu0 %v558
    %560 = vmatprep.subr.mxu0 0.0
    %v561 = vand.u32 %v152, 4294901760
    %v562 = vsub.f32 %v152, %v561
    %563 = vmatpush1.xpose.msra.mxu0 %v562
    %564 = vmatprep.subr.mxu0 0.0
    %v565 = vand.u32 %v153, 4294901760
    %v566 = vsub.f32 %v153, %v565
    %567 = vmatpush1.xpose.msra.mxu0 %v566
    %568 = vmatprep.subr.mxu0 0.0
    %v569 = vand.u32 %v154, 4294901760
    %v570 = vsub.f32 %v154, %v569
    %571 = vmatpush1.xpose.msra.mxu0 %v570
    %572 = vmatprep.subr.mxu0 0.0
    %v573 = vand.u32 %v155, 4294901760
    %v574 = vsub.f32 %v155, %v573
    %575 = vmatpush1.xpose.msra.mxu0 %v574
    %576 = vmatprep.subr.mxu0 0.0
    %v577 = vand.u32 %v156, 4294901760
    %v578 = vsub.f32 %v156, %v577
    %579 = vmatpush1.xpose.msra.mxu0 %v578
    %580 = vmatprep.subr.mxu0 0.0
    %v581 = vand.u32 %v157, 4294901760
    %v582 = vsub.f32 %v157, %v581
    %583 = vmatpush1.xpose.msra.mxu0 %v582
    %584 = vmatprep.subr.mxu0 0.0
    %v585 = vand.u32 %v158, 4294901760
    %v586 = vsub.f32 %v158, %v585
    %587 = vmatpush1.xpose.msra.mxu0 %v586
    %588 = vmatprep.subr.mxu0 0.0
    %v589 = vand.u32 %v159, 4294901760
    %v590 = vsub.f32 %v159, %v589
    %591 = vmatpush1.xpose.msra.mxu0 %v590
    %592 = vmatprep.subr.mxu0 0.0
    %v593 = vand.u32 %v160, 4294901760
    %v594 = vsub.f32 %v160, %v593
    %595 = vmatpush1.xpose.msra.mxu0 %v594
    %596 = vmatprep.subr.mxu0 0.0
    %v597 = vand.u32 %v161, 4294901760
    %v598 = vsub.f32 %v161, %v597
    %599 = vmatpush1.xpose.msra.mxu0 %v598
    %600 = vmatprep.subr.mxu0 0.0
    %v601 = vand.u32 %v162, 4294901760
    %v602 = vsub.f32 %v162, %v601
    %603 = vmatpush1.xpose.msra.mxu0 %v602
    %604 = vmatprep.subr.mxu0 0.0
    %v605 = vand.u32 %v163, 4294901760
    %v606 = vsub.f32 %v163, %v605
    %607 = vmatpush1.xpose.msra.mxu0 %v606
    %608 = vmatprep.subr.mxu0 0.0
    %v609 = vand.u32 %v164, 4294901760
    %v610 = vsub.f32 %v164, %v609
    %611 = vmatpush1.xpose.msra.mxu0 %v610
    %612 = vmatprep.subr.mxu0 0.0
    %v613 = vand.u32 %v165, 4294901760
    %v614 = vsub.f32 %v165, %v613
    %615 = vmatpush1.xpose.msra.mxu0 %v614
    %616 = vmatprep.subr.mxu0 0.0
    %v617 = vand.u32 %v166, 4294901760
    %v618 = vsub.f32 %v166, %v617
    %619 = vmatpush1.xpose.msra.mxu0 %v618
    %620 = vmatprep.subr.mxu0 0.0
    %v621 = vand.u32 %v167, 4294901760
    %v622 = vsub.f32 %v167, %v621
    %623 = vmatpush1.xpose.msra.mxu0 %v622
    %624 = vmatprep.subr.mxu0 0.0
    %v625 = vand.u32 %v168, 4294901760
    %v626 = vsub.f32 %v168, %v625
    %627 = vmatpush1.xpose.msra.mxu0 %v626
    %628 = vmatprep.subr.mxu0 0.0
    %v629 = vand.u32 %v169, 4294901760
    %v630 = vsub.f32 %v169, %v629
    %631 = vmatpush1.xpose.msra.mxu0 %v630
    %632 = vmatprep.mubr.f32.mxu0 0.0
    %633 = vmatmul.mubr.f32.gmra.mrb[0].mxu0 0.0
    %v634 = vpop.f32.mrb[0].mxu0
    %v635 = vadd.f32 %v500, %v634
    %v636 = vpop.f32.mrb[0].mxu0
    %v637 = vadd.f32 %v502, %v636
    %638 = vdwg.mxu0
    %639 = vmatprep.subr.mxu0 0.0
    %v640 = vand.u32 %v138, 4294901760
    %641 = vmatpush1.xpose.msra.mxu0 %v640
    %642 = vmatprep.subr.mxu0 0.0
    %v643 = vand.u32 %v139, 4294901760
    %644 = vmatpush1.xpose.msra.mxu0 %v643
    %645 = vmatprep.subr.mxu0 0.0
    %v646 = vand.u32 %v140, 4294901760
    %647 = vmatpush1.xpose.msra.mxu0 %v646
    %648 = vmatprep.subr.mxu0 0.0
    %v649 = vand.u32 %v141, 4294901760
    %650 = vmatpush1.xpose.msra.mxu0 %v649
    %651 = vmatprep.subr.mxu0 0.0
    %v652 = vand.u32 %v142, 4294901760
    %653 = vmatpush1.xpose.msra.mxu0 %v652
    %654 = vmatprep.subr.mxu0 0.0
    %v655 = vand.u32 %v143, 4294901760
    %656 = vmatpush1.xpose.msra.mxu0 %v655
    %657 = vmatprep.subr.mxu0 0.0
    %v658 = vand.u32 %v144, 4294901760
    %659 = vmatpush1.xpose.msra.mxu0 %v658
    %660 = vmatprep.subr.mxu0 0.0
    %v661 = vand.u32 %v145, 4294901760
    %662 = vmatpush1.xpose.msra.mxu0 %v661
    %663 = vmatprep.subr.mxu0 0.0
    %v664 = vand.u32 %v146, 4294901760
    %665 = vmatpush1.xpose.msra.mxu0 %v664
    %666 = vmatprep.subr.mxu0 0.0
    %v667 = vand.u32 %v147, 4294901760
    %668 = vmatpush1.xpose.msra.mxu0 %v667
    %669 = vmatprep.subr.mxu0 0.0
    %v670 = vand.u32 %v148, 4294901760
    %671 = vmatpush1.xpose.msra.mxu0 %v670
    %672 = vmatprep.subr.mxu0 0.0
    %v673 = vand.u32 %v149, 4294901760
    %674 = vmatpush1.xpose.msra.mxu0 %v673
    %675 = vmatprep.subr.mxu0 0.0
    %v676 = vand.u32 %v150, 4294901760
    %677 = vmatpush1.xpose.msra.mxu0 %v676
    %678 = vmatprep.subr.mxu0 0.0
    %v679 = vand.u32 %v151, 4294901760
    %680 = vmatpush1.xpose.msra.mxu0 %v679
    %681 = vmatprep.subr.mxu0 0.0
    %v682 = vand.u32 %v152, 4294901760
    %683 = vmatpush1.xpose.msra.mxu0 %v682
    %684 = vmatprep.subr.mxu0 0.0
    %v685 = vand.u32 %v153, 4294901760
    %686 = vmatpush1.xpose.msra.mxu0 %v685
    %687 = vmatprep.subr.mxu0 0.0
    %v688 = vand.u32 %v154, 4294901760
    %689 = vmatpush1.xpose.msra.mxu0 %v688
    %690 = vmatprep.subr.mxu0 0.0
    %v691 = vand.u32 %v155, 4294901760
    %692 = vmatpush1.xpose.msra.mxu0 %v691
    %693 = vmatprep.subr.mxu0 0.0
    %v694 = vand.u32 %v156, 4294901760
    %695 = vmatpush1.xpose.msra.mxu0 %v694
    %696 = vmatprep.subr.mxu0 0.0
    %v697 = vand.u32 %v157, 4294901760
    %698 = vmatpush1.xpose.msra.mxu0 %v697
    %699 = vmatprep.subr.mxu0 0.0
    %v700 = vand.u32 %v158, 4294901760
    %701 = vmatpush1.xpose.msra.mxu0 %v700
    %702 = vmatprep.subr.mxu0 0.0
    %v703 = vand.u32 %v159, 4294901760
    %704 = vmatpush1.xpose.msra.mxu0 %v703
    %705 = vmatprep.subr.mxu0 0.0
    %v706 = vand.u32 %v160, 4294901760
    %707 = vmatpush1.xpose.msra.mxu0 %v706
    %708 = vmatprep.subr.mxu0 0.0
    %v709 = vand.u32 %v161, 4294901760
    %710 = vmatpush1.xpose.msra.mxu0 %v709
    %711 = vmatprep.subr.mxu0 0.0
    %v712 = vand.u32 %v162, 4294901760
    %713 = vmatpush1.xpose.msra.mxu0 %v712
    %714 = vmatprep.subr.mxu0 0.0
    %v715 = vand.u32 %v163, 4294901760
    %716 = vmatpush1.xpose.msra.mxu0 %v715
    %717 = vmatprep.subr.mxu0 0.0
    %v718 = vand.u32 %v164, 4294901760
    %719 = vmatpush1.xpose.msra.mxu0 %v718
    %720 = vmatprep.subr.mxu0 0.0
    %v721 = vand.u32 %v165, 4294901760
    %722 = vmatpush1.xpose.msra.mxu0 %v721
    %723 = vmatprep.subr.mxu0 0.0
    %v724 = vand.u32 %v166, 4294901760
    %725 = vmatpush1.xpose.msra.mxu0 %v724
    %726 = vmatprep.subr.mxu0 0.0
    %v727 = vand.u32 %v167, 4294901760
    %728 = vmatpush1.xpose.msra.mxu0 %v727
    %729 = vmatprep.subr.mxu0 0.0
    %v730 = vand.u32 %v168, 4294901760
    %731 = vmatpush1.xpose.msra.mxu0 %v730
    %732 = vmatprep.subr.mxu0 0.0
    %v733 = vand.u32 %v169, 4294901760
    %734 = vmatpush1.xpose.msra.mxu0 %v733
    %735 = vmatprep.mubr.f32.mxu0 0.0
    %736 = vmatmul.mubr.f32.gmra.mrb[0].mxu0 0.0
    %v737 = vpop.f32.mrb[0].mxu0
    %v738 = vadd.f32 %v635, %v737
    %v739 = vpop.f32.mrb[0].mxu0
    %v740 = vadd.f32 %v637, %v739
    %741 = vdwg.mxu0
    %742 = vmatprep.subr.mxu0 0.0
    %v743 = vand.u32 %v138, 4294901760
    %v744 = vsub.f32 %v138, %v743
    %v745 = vand.u32 %v744, 4294901760
    %746 = vmatpush1.xpose.msra.mxu0 %v745
    %747 = vmatprep.subr.mxu0 0.0
    %v748 = vand.u32 %v139, 4294901760
    %v749 = vsub.f32 %v139, %v748
    %v750 = vand.u32 %v749, 4294901760
    %751 = vmatpush1.xpose.msra.mxu0 %v750
    %752 = vmatprep.subr.mxu0 0.0
    %v753 = vand.u32 %v140, 4294901760
    %v754 = vsub.f32 %v140, %v753
    %v755 = vand.u32 %v754, 4294901760
    %756 = vmatpush1.xpose.msra.mxu0 %v755
    %757 = vmatprep.subr.mxu0 0.0
    %v758 = vand.u32 %v141, 4294901760
    %v759 = vsub.f32 %v141, %v758
    %v760 = vand.u32 %v759, 4294901760
    %761 = vmatpush1.xpose.msra.mxu0 %v760
    %762 = vmatprep.subr.mxu0 0.0
    %v763 = vand.u32 %v142, 4294901760
    %v764 = vsub.f32 %v142, %v763
    %v765 = vand.u32 %v764, 4294901760
    %766 = vmatpush1.xpose.msra.mxu0 %v765
    %767 = vmatprep.subr.mxu0 0.0
    %v768 = vand.u32 %v143, 4294901760
    %v769 = vsub.f32 %v143, %v768
    %v770 = vand.u32 %v769, 4294901760
    %771 = vmatpush1.xpose.msra.mxu0 %v770
    %772 = vmatprep.subr.mxu0 0.0
    %v773 = vand.u32 %v144, 4294901760
    %v774 = vsub.f32 %v144, %v773
    %v775 = vand.u32 %v774, 4294901760
    %776 = vmatpush1.xpose.msra.mxu0 %v775
    %777 = vmatprep.subr.mxu0 0.0
    %v778 = vand.u32 %v145, 4294901760
    %v779 = vsub.f32 %v145, %v778
    %v780 = vand.u32 %v779, 4294901760
    %781 = vmatpush1.xpose.msra.mxu0 %v780
    %782 = vmatprep.subr.mxu0 0.0
    %v783 = vand.u32 %v146, 4294901760
    %v784 = vsub.f32 %v146, %v783
    %v785 = vand.u32 %v784, 4294901760
    %786 = vmatpush1.xpose.msra.mxu0 %v785
    %787 = vmatprep.subr.mxu0 0.0
    %v788 = vand.u32 %v147, 4294901760
    %v789 = vsub.f32 %v147, %v788
    %v790 = vand.u32 %v789, 4294901760
    %791 = vmatpush1.xpose.msra.mxu0 %v790
    %792 = vmatprep.subr.mxu0 0.0
    %v793 = vand.u32 %v148, 4294901760
    %v794 = vsub.f32 %v148, %v793
    %v795 = vand.u32 %v794, 4294901760
    %796 = vmatpush1.xpose.msra.mxu0 %v795
    %797 = vmatprep.subr.mxu0 0.0
    %v798 = vand.u32 %v149, 4294901760
    %v799 = vsub.f32 %v149, %v798
    %v800 = vand.u32 %v799, 4294901760
    %801 = vmatpush1.xpose.msra.mxu0 %v800
    %802 = vmatprep.subr.mxu0 0.0
    %v803 = vand.u32 %v150, 4294901760
    %v804 = vsub.f32 %v150, %v803
    %v805 = vand.u32 %v804, 4294901760
    %806 = vmatpush1.xpose.msra.mxu0 %v805
    %807 = vmatprep.subr.mxu0 0.0
    %v808 = vand.u32 %v151, 4294901760
    %v809 = vsub.f32 %v151, %v808
    %v810 = vand.u32 %v809, 4294901760
    %811 = vmatpush1.xpose.msra.mxu0 %v810
    %812 = vmatprep.subr.mxu0 0.0
    %v813 = vand.u32 %v152, 4294901760
    %v814 = vsub.f32 %v152, %v813
    %v815 = vand.u32 %v814, 4294901760
    %816 = vmatpush1.xpose.msra.mxu0 %v815
    %817 = vmatprep.subr.mxu0 0.0
    %v818 = vand.u32 %v153, 4294901760
    %v819 = vsub.f32 %v153, %v818
    %v820 = vand.u32 %v819, 4294901760
    %821 = vmatpush1.xpose.msra.mxu0 %v820
    %822 = vmatprep.subr.mxu0 0.0
    %v823 = vand.u32 %v154, 4294901760
    %v824 = vsub.f32 %v154, %v823
    %v825 = vand.u32 %v824, 4294901760
    %826 = vmatpush1.xpose.msra.mxu0 %v825
    %827 = vmatprep.subr.mxu0 0.0
    %v828 = vand.u32 %v155, 4294901760
    %v829 = vsub.f32 %v155, %v828
    %v830 = vand.u32 %v829, 4294901760
    %831 = vmatpush1.xpose.msra.mxu0 %v830
    %832 = vmatprep.subr.mxu0 0.0
    %v833 = vand.u32 %v156, 4294901760
    %v834 = vsub.f32 %v156, %v833
    %v835 = vand.u32 %v834, 4294901760
    %836 = vmatpush1.xpose.msra.mxu0 %v835
    %837 = vmatprep.subr.mxu0 0.0
    %v838 = vand.u32 %v157, 4294901760
    %v839 = vsub.f32 %v157, %v838
    %v840 = vand.u32 %v839, 4294901760
    %841 = vmatpush1.xpose.msra.mxu0 %v840
    %842 = vmatprep.subr.mxu0 0.0
    %v843 = vand.u32 %v158, 4294901760
    %v844 = vsub.f32 %v158, %v843
    %v845 = vand.u32 %v844, 4294901760
    %846 = vmatpush1.xpose.msra.mxu0 %v845
    %847 = vmatprep.subr.mxu0 0.0
    %v848 = vand.u32 %v159, 4294901760
    %v849 = vsub.f32 %v159, %v848
    %v850 = vand.u32 %v849, 4294901760
    %851 = vmatpush1.xpose.msra.mxu0 %v850
    %852 = vmatprep.subr.mxu0 0.0
    %v853 = vand.u32 %v160, 4294901760
    %v854 = vsub.f32 %v160, %v853
    %v855 = vand.u32 %v854, 4294901760
    %856 = vmatpush1.xpose.msra.mxu0 %v855
    %857 = vmatprep.subr.mxu0 0.0
    %v858 = vand.u32 %v161, 4294901760
    %v859 = vsub.f32 %v161, %v858
    %v860 = vand.u32 %v859, 4294901760
    %861 = vmatpush1.xpose.msra.mxu0 %v860
    %862 = vmatprep.subr.mxu0 0.0
    %v863 = vand.u32 %v162, 4294901760
    %v864 = vsub.f32 %v162, %v863
    %v865 = vand.u32 %v864, 4294901760
    %866 = vmatpush1.xpose.msra.mxu0 %v865
    %867 = vmatprep.subr.mxu0 0.0
    %v868 = vand.u32 %v163, 4294901760
    %v869 = vsub.f32 %v163, %v868
    %v870 = vand.u32 %v869, 4294901760
    %871 = vmatpush1.xpose.msra.mxu0 %v870
    %872 = vmatprep.subr.mxu0 0.0
    %v873 = vand.u32 %v164, 4294901760
    %v874 = vsub.f32 %v164, %v873
    %v875 = vand.u32 %v874, 4294901760
    %876 = vmatpush1.xpose.msra.mxu0 %v875
    %877 = vmatprep.subr.mxu0 0.0
    %v878 = vand.u32 %v165, 4294901760
    %v879 = vsub.f32 %v165, %v878
    %v880 = vand.u32 %v879, 4294901760
    %881 = vmatpush1.xpose.msra.mxu0 %v880
    %882 = vmatprep.subr.mxu0 0.0
    %v883 = vand.u32 %v166, 4294901760
    %v884 = vsub.f32 %v166, %v883
    %v885 = vand.u32 %v884, 4294901760
    %886 = vmatpush1.xpose.msra.mxu0 %v885
    %887 = vmatprep.subr.mxu0 0.0
    %v888 = vand.u32 %v167, 4294901760
    %v889 = vsub.f32 %v167, %v888
    %v890 = vand.u32 %v889, 4294901760
    %891 = vmatpush1.xpose.msra.mxu0 %v890
    %892 = vmatprep.subr.mxu0 0.0
    %v893 = vand.u32 %v168, 4294901760
    %v894 = vsub.f32 %v168, %v893
    %v895 = vand.u32 %v894, 4294901760
    %896 = vmatpush1.xpose.msra.mxu0 %v895
    %897 = vmatprep.subr.mxu0 0.0
    %v898 = vand.u32 %v169, 4294901760
    %v899 = vsub.f32 %v169, %v898
    %v900 = vand.u32 %v899, 4294901760
    %901 = vmatpush1.xpose.msra.mxu0 %v900
    %902 = vmatprep.mubr.f32.mxu0 0.0
    %903 = vmatmul.mubr.f32.gmra.mrb[0].mxu0 1.0
    %v904 = vpop.f32.mrb[0].mxu0
    %v905 = vadd.f32 %v738, %v904
    %v906 = vpop.f32.mrb[0].mxu0
    %v907 = vadd.f32 %v740, %v906
    %908 = vdwg.mxu0
    %909 = vmatprep.subr.mxu0 0.0
    %v910 = vand.u32 %v138, 4294901760
    %911 = vmatpush1.xpose.msra.mxu0 %v910
    %912 = vmatprep.subr.mxu0 0.0
    %v913 = vand.u32 %v139, 4294901760
    %914 = vmatpush1.xpose.msra.mxu0 %v913
    %915 = vmatprep.subr.mxu0 0.0
    %v916 = vand.u32 %v140, 4294901760
    %917 = vmatpush1.xpose.msra.mxu0 %v916
    %918 = vmatprep.subr.mxu0 0.0
    %v919 = vand.u32 %v141, 4294901760
    %920 = vmatpush1.xpose.msra.mxu0 %v919
    %921 = vmatprep.subr.mxu0 0.0
    %v922 = vand.u32 %v142, 4294901760
    %923 = vmatpush1.xpose.msra.mxu0 %v922
    %924 = vmatprep.subr.mxu0 0.0
    %v925 = vand.u32 %v143, 4294901760
    %926 = vmatpush1.xpose.msra.mxu0 %v925
    %927 = vmatprep.subr.mxu0 0.0
    %v928 = vand.u32 %v144, 4294901760
    %929 = vmatpush1.xpose.msra.mxu0 %v928
    %930 = vmatprep.subr.mxu0 0.0
    %v931 = vand.u32 %v145, 4294901760
    %932 = vmatpush1.xpose.msra.mxu0 %v931
    %933 = vmatprep.subr.mxu0 0.0
    %v934 = vand.u32 %v146, 4294901760
    %935 = vmatpush1.xpose.msra.mxu0 %v934
    %936 = vmatprep.subr.mxu0 0.0
    %v937 = vand.u32 %v147, 4294901760
    %938 = vmatpush1.xpose.msra.mxu0 %v937
    %939 = vmatprep.subr.mxu0 0.0
    %v940 = vand.u32 %v148, 4294901760
    %941 = vmatpush1.xpose.msra.mxu0 %v940
    %942 = vmatprep.subr.mxu0 0.0
    %v943 = vand.u32 %v149, 4294901760
    %944 = vmatpush1.xpose.msra.mxu0 %v943
    %945 = vmatprep.subr.mxu0 0.0
    %v946 = vand.u32 %v150, 4294901760
    %947 = vmatpush1.xpose.msra.mxu0 %v946
    %948 = vmatprep.subr.mxu0 0.0
    %v949 = vand.u32 %v151, 4294901760
    %950 = vmatpush1.xpose.msra.mxu0 %v949
    %951 = vmatprep.subr.mxu0 0.0
    %v952 = vand.u32 %v152, 4294901760
    %953 = vmatpush1.xpose.msra.mxu0 %v952
    %954 = vmatprep.subr.mxu0 0.0
    %v955 = vand.u32 %v153, 4294901760
    %956 = vmatpush1.xpose.msra.mxu0 %v955
    %957 = vmatprep.subr.mxu0 0.0
    %v958 = vand.u32 %v154, 4294901760
    %959 = vmatpush1.xpose.msra.mxu0 %v958
    %960 = vmatprep.subr.mxu0 0.0
    %v961 = vand.u32 %v155, 4294901760
    %962 = vmatpush1.xpose.msra.mxu0 %v961
    %963 = vmatprep.subr.mxu0 0.0
    %v964 = vand.u32 %v156, 4294901760
    %965 = vmatpush1.xpose.msra.mxu0 %v964
    %966 = vmatprep.subr.mxu0 0.0
    %v967 = vand.u32 %v157, 4294901760
    %968 = vmatpush1.xpose.msra.mxu0 %v967
    %969 = vmatprep.subr.mxu0 0.0
    %v970 = vand.u32 %v158, 4294901760
    %971 = vmatpush1.xpose.msra.mxu0 %v970
    %972 = vmatprep.subr.mxu0 0.0
    %v973 = vand.u32 %v159, 4294901760
    %974 = vmatpush1.xpose.msra.mxu0 %v973
    %975 = vmatprep.subr.mxu0 0.0
    %v976 = vand.u32 %v160, 4294901760
    %977 = vmatpush1.xpose.msra.mxu0 %v976
    %978 = vmatprep.subr.mxu0 0.0
    %v979 = vand.u32 %v161, 4294901760
    %980 = vmatpush1.xpose.msra.mxu0 %v979
    %981 = vmatprep.subr.mxu0 0.0
    %v982 = vand.u32 %v162, 4294901760
    %983 = vmatpush1.xpose.msra.mxu0 %v982
    %984 = vmatprep.subr.mxu0 0.0
    %v985 = vand.u32 %v163, 4294901760
    %986 = vmatpush1.xpose.msra.mxu0 %v985
    %987 = vmatprep.subr.mxu0 0.0
    %v988 = vand.u32 %v164, 4294901760
    %989 = vmatpush1.xpose.msra.mxu0 %v988
    %990 = vmatprep.subr.mxu0 0.0
    %v991 = vand.u32 %v165, 4294901760
    %992 = vmatpush1.xpose.msra.mxu0 %v991
    %993 = vmatprep.subr.mxu0 0.0
    %v994 = vand.u32 %v166, 4294901760
    %995 = vmatpush1.xpose.msra.mxu0 %v994
    %996 = vmatprep.subr.mxu0 0.0
    %v997 = vand.u32 %v167, 4294901760
    %998 = vmatpush1.xpose.msra.mxu0 %v997
    %999 = vmatprep.subr.mxu0 0.0
    %v1000 = vand.u32 %v168, 4294901760
    %1001 = vmatpush1.xpose.msra.mxu0 %v1000
    %1002 = vmatprep.subr.mxu0 0.0
    %v1003 = vand.u32 %v169, 4294901760
    %1004 = vmatpush1.xpose.msra.mxu0 %v1003
    %1005 = vmatprep.mubr.f32.mxu0 0.0
    %1006 = vmatmul.mubr.f32.gmra.mrb[0].mxu0 1.0
    %v1007 = vpop.f32.mrb[0].mxu0
    %v1008 = vadd.f32 %v905, %v1007
    %v1009 = vpop.f32.mrb[0].mxu0
    %v1010 = vadd.f32 %v907, %v1009
    %1011 = vdwg.mxu0
    %1012 = vadd.xlane.f32.xlu0 %v138
    %v1013 = vpop.xlane.xlu0 %1012
    %1014 = vadd.xlane.f32.xlu0 %v139
    %v1015 = vpop.xlane.xlu0 %1014
    %1016 = vadd.xlane.f32.xlu0 %v140
    %v1017 = vpop.xlane.xlu0 %1016
    %1018 = vadd.xlane.f32.xlu0 %v141
    %v1019 = vpop.xlane.xlu0 %1018
    %1020 = vadd.xlane.f32.xlu0 %v142
    %v1021 = vpop.xlane.xlu0 %1020
    %1022 = vadd.xlane.f32.xlu0 %v143
    %v1023 = vpop.xlane.xlu0 %1022
    %1024 = vadd.xlane.f32.xlu0 %v144
    %v1025 = vpop.xlane.xlu0 %1024
    %1026 = vadd.xlane.f32.xlu0 %v145
    %v1027 = vpop.xlane.xlu0 %1026
    %1028 = vadd.xlane.f32.xlu0 %v146
    %v1029 = vpop.xlane.xlu0 %1028
    %1030 = vadd.xlane.f32.xlu0 %v147
    %v1031 = vpop.xlane.xlu0 %1030
    %1032 = vadd.xlane.f32.xlu0 %v148
    %v1033 = vpop.xlane.xlu0 %1032
    %1034 = vadd.xlane.f32.xlu0 %v149
    %v1035 = vpop.xlane.xlu0 %1034
    %1036 = vadd.xlane.f32.xlu0 %v150
    %v1037 = vpop.xlane.xlu0 %1036
    %1038 = vadd.xlane.f32.xlu0 %v151
    %v1039 = vpop.xlane.xlu0 %1038
    %1040 = vadd.xlane.f32.xlu0 %v152
    %v1041 = vpop.xlane.xlu0 %1040
    %1042 = vadd.xlane.f32.xlu0 %v153
    %v1043 = vpop.xlane.xlu0 %1042
    %1044 = vadd.xlane.f32.xlu0 %v154
    %v1045 = vpop.xlane.xlu0 %1044
    %1046 = vadd.xlane.f32.xlu0 %v155
    %v1047 = vpop.xlane.xlu0 %1046
    %1048 = vadd.xlane.f32.xlu0 %v156
    %v1049 = vpop.xlane.xlu0 %1048
    %1050 = vadd.xlane.f32.xlu0 %v157
    %v1051 = vpop.xlane.xlu0 %1050
    %1052 = vadd.xlane.f32.xlu0 %v158
    %v1053 = vpop.xlane.xlu0 %1052
    %1054 = vadd.xlane.f32.xlu0 %v159
    %v1055 = vpop.xlane.xlu0 %1054
    %1056 = vadd.xlane.f32.xlu0 %v160
    %v1057 = vpop.xlane.xlu0 %1056
    %1058 = vadd.xlane.f32.xlu0 %v161
    %v1059 = vpop.xlane.xlu0 %1058
    %1060 = vadd.xlane.f32.xlu0 %v162
    %v1061 = vpop.xlane.xlu0 %1060
    %1062 = vadd.xlane.f32.xlu0 %v163
    %v1063 = vpop.xlane.xlu0 %1062
    %1064 = vadd.xlane.f32.xlu0 %v164
    %v1065 = vpop.xlane.xlu0 %1064
    %1066 = vadd.xlane.f32.xlu0 %v165
    %v1067 = vpop.xlane.xlu0 %1066
    %1068 = vadd.xlane.f32.xlu0 %v166
    %v1069 = vpop.xlane.xlu0 %1068
    %1070 = vadd.xlane.f32.xlu0 %v167
    %v1071 = vpop.xlane.xlu0 %1070
    %1072 = vadd.xlane.f32.xlu0 %v168
    %v1073 = vpop.xlane.xlu0 %1072
    %1074 = vadd.xlane.f32.xlu0 %v169
    %v1075 = vpop.xlane.xlu0 %1074
    %v1076 = vrsqrt.pop %v1013
    %v1077 = vmul.f32 %v1013, %v1076
    %vm1078 = vcmp.eq.f32.partialorder %v1013, inf
    %v1079 = vsel %vm1078, %v1013, %v1077
    %vm1080 = vcmp.eq.f32.partialorder %v1013, 0.0
    %v1081 = vand.u32 %v1013, 2147483648
    %v1082 = vsel %vm1080, %v1081, %v1079
    %v1083 = vrsqrt.pop %v1015
    %v1084 = vmul.f32 %v1015, %v1083
    %vm1085 = vcmp.eq.f32.partialorder %v1015, inf
    %v1086 = vsel %vm1085, %v1015, %v1084
    %vm1087 = vcmp.eq.f32.partialorder %v1015, 0.0
    %v1088 = vand.u32 %v1015, 2147483648
    %v1089 = vsel %vm1087, %v1088, %v1086
    %v1090 = vrsqrt.pop %v1017
    %v1091 = vmul.f32 %v1017, %v1090
    %vm1092 = vcmp.eq.f32.partialorder %v1017, inf
    %v1093 = vsel %vm1092, %v1017, %v1091
    %vm1094 = vcmp.eq.f32.partialorder %v1017, 0.0
    %v1095 = vand.u32 %v1017, 2147483648
    %v1096 = vsel %vm1094, %v1095, %v1093
    %v1097 = vrsqrt.pop %v1019
    %v1098 = vmul.f32 %v1019, %v1097
    %vm1099 = vcmp.eq.f32.partialorder %v1019, inf
    %v1100 = vsel %vm1099, %v1019, %v1098
    %vm1101 = vcmp.eq.f32.partialorder %v1019, 0.0
    %v1102 = vand.u32 %v1019, 2147483648
    %v1103 = vsel %vm1101, %v1102, %v1100
    %v1104 = vrsqrt.pop %v1021
    %v1105 = vmul.f32 %v1021, %v1104
    %vm1106 = vcmp.eq.f32.partialorder %v1021, inf
    %v1107 = vsel %vm1106, %v1021, %v1105
    %vm1108 = vcmp.eq.f32.partialorder %v1021, 0.0
    %v1109 = vand.u32 %v1021, 2147483648
    %v1110 = vsel %vm1108, %v1109, %v1107
    %v1111 = vrsqrt.pop %v1023
    %v1112 = vmul.f32 %v1023, %v1111
    %vm1113 = vcmp.eq.f32.partialorder %v1023, inf
    %v1114 = vsel %vm1113, %v1023, %v1112
    %vm1115 = vcmp.eq.f32.partialorder %v1023, 0.0
    %v1116 = vand.u32 %v1023, 2147483648
    %v1117 = vsel %vm1115, %v1116, %v1114
    %v1118 = vrsqrt.pop %v1025
    %v1119 = vmul.f32 %v1025, %v1118
    %vm1120 = vcmp.eq.f32.partialorder %v1025, inf
    %v1121 = vsel %vm1120, %v1025, %v1119
    %vm1122 = vcmp.eq.f32.partialorder %v1025, 0.0
    %v1123 = vand.u32 %v1025, 2147483648
    %v1124 = vsel %vm1122, %v1123, %v1121
    %v1125 = vrsqrt.pop %v1027
    %v1126 = vmul.f32 %v1027, %v1125
    %vm1127 = vcmp.eq.f32.partialorder %v1027, inf
    %v1128 = vsel %vm1127, %v1027, %v1126
    %vm1129 = vcmp.eq.f32.partialorder %v1027, 0.0
    %v1130 = vand.u32 %v1027, 2147483648
    %v1131 = vsel %vm1129, %v1130, %v1128
    %v1132 = vrsqrt.pop %v1029
    %v1133 = vmul.f32 %v1029, %v1132
    %vm1134 = vcmp.eq.f32.partialorder %v1029, inf
    %v1135 = vsel %vm1134, %v1029, %v1133
    %vm1136 = vcmp.eq.f32.partialorder %v1029, 0.0
    %v1137 = vand.u32 %v1029, 2147483648
    %v1138 = vsel %vm1136, %v1137, %v1135
    %v1139 = vrsqrt.pop %v1031
    %v1140 = vmul.f32 %v1031, %v1139
    %vm1141 = vcmp.eq.f32.partialorder %v1031, inf
    %v1142 = vsel %vm1141, %v1031, %v1140
    %vm1143 = vcmp.eq.f32.partialorder %v1031, 0.0
    %v1144 = vand.u32 %v1031, 2147483648
    %v1145 = vsel %vm1143, %v1144, %v1142
    %v1146 = vrsqrt.pop %v1033
    %v1147 = vmul.f32 %v1033, %v1146
    %vm1148 = vcmp.eq.f32.partialorder %v1033, inf
    %v1149 = vsel %vm1148, %v1033, %v1147
    %vm1150 = vcmp.eq.f32.partialorder %v1033, 0.0
    %v1151 = vand.u32 %v1033, 2147483648
    %v1152 = vsel %vm1150, %v1151, %v1149
    %v1153 = vrsqrt.pop %v1035
    %v1154 = vmul.f32 %v1035, %v1153
    %vm1155 = vcmp.eq.f32.partialorder %v1035, inf
    %v1156 = vsel %vm1155, %v1035, %v1154
    %vm1157 = vcmp.eq.f32.partialorder %v1035, 0.0
    %v1158 = vand.u32 %v1035, 2147483648
    %v1159 = vsel %vm1157, %v1158, %v1156
    %v1160 = vrsqrt.pop %v1037
    %v1161 = vmul.f32 %v1037, %v1160
    %vm1162 = vcmp.eq.f32.partialorder %v1037, inf
    %v1163 = vsel %vm1162, %v1037, %v1161
    %vm1164 = vcmp.eq.f32.partialorder %v1037, 0.0
    %v1165 = vand.u32 %v1037, 2147483648
    %v1166 = vsel %vm1164, %v1165, %v1163
    %v1167 = vrsqrt.pop %v1039
    %v1168 = vmul.f32 %v1039, %v1167
    %vm1169 = vcmp.eq.f32.partialorder %v1039, inf
    %v1170 = vsel %vm1169, %v1039, %v1168
    %vm1171 = vcmp.eq.f32.partialorder %v1039, 0.0
    %v1172 = vand.u32 %v1039, 2147483648
    %v1173 = vsel %vm1171, %v1172, %v1170
    %v1174 = vrsqrt.pop %v1041
    %v1175 = vmul.f32 %v1041, %v1174
    %vm1176 = vcmp.eq.f32.partialorder %v1041, inf
    %v1177 = vsel %vm1176, %v1041, %v1175
    %vm1178 = vcmp.eq.f32.partialorder %v1041, 0.0
    %v1179 = vand.u32 %v1041, 2147483648
    %v1180 = vsel %vm1178, %v1179, %v1177
    %v1181 = vrsqrt.pop %v1043
    %v1182 = vmul.f32 %v1043, %v1181
    %vm1183 = vcmp.eq.f32.partialorder %v1043, inf
    %v1184 = vsel %vm1183, %v1043, %v1182
    %vm1185 = vcmp.eq.f32.partialorder %v1043, 0.0
    %v1186 = vand.u32 %v1043, 2147483648
    %v1187 = vsel %vm1185, %v1186, %v1184
    %v1188 = vrsqrt.pop %v1045
    %v1189 = vmul.f32 %v1045, %v1188
    %vm1190 = vcmp.eq.f32.partialorder %v1045, inf
    %v1191 = vsel %vm1190, %v1045, %v1189
    %vm1192 = vcmp.eq.f32.partialorder %v1045, 0.0
    %v1193 = vand.u32 %v1045, 2147483648
    %v1194 = vsel %vm1192, %v1193, %v1191
    %v1195 = vrsqrt.pop %v1047
    %v1196 = vmul.f32 %v1047, %v1195
    %vm1197 = vcmp.eq.f32.partialorder %v1047, inf
    %v1198 = vsel %vm1197, %v1047, %v1196
    %vm1199 = vcmp.eq.f32.partialorder %v1047, 0.0
    %v1200 = vand.u32 %v1047, 2147483648
    %v1201 = vsel %vm1199, %v1200, %v1198
    %v1202 = vrsqrt.pop %v1049
    %v1203 = vmul.f32 %v1049, %v1202
    %vm1204 = vcmp.eq.f32.partialorder %v1049, inf
    %v1205 = vsel %vm1204, %v1049, %v1203
    %vm1206 = vcmp.eq.f32.partialorder %v1049, 0.0
    %v1207 = vand.u32 %v1049, 2147483648
    %v1208 = vsel %vm1206, %v1207, %v1205
    %v1209 = vrsqrt.pop %v1051
    %v1210 = vmul.f32 %v1051, %v1209
    %vm1211 = vcmp.eq.f32.partialorder %v1051, inf
    %v1212 = vsel %vm1211, %v1051, %v1210
    %vm1213 = vcmp.eq.f32.partialorder %v1051, 0.0
    %v1214 = vand.u32 %v1051, 2147483648
    %v1215 = vsel %vm1213, %v1214, %v1212
    %v1216 = vrsqrt.pop %v1053
    %v1217 = vmul.f32 %v1053, %v1216
    %vm1218 = vcmp.eq.f32.partialorder %v1053, inf
    %v1219 = vsel %vm1218, %v1053, %v1217
    %vm1220 = vcmp.eq.f32.partialorder %v1053, 0.0
    %v1221 = vand.u32 %v1053, 2147483648
    %v1222 = vsel %vm1220, %v1221, %v1219
    %v1223 = vrsqrt.pop %v1055
    %v1224 = vmul.f32 %v1055, %v1223
    %vm1225 = vcmp.eq.f32.partialorder %v1055, inf
    %v1226 = vsel %vm1225, %v1055, %v1224
    %vm1227 = vcmp.eq.f32.partialorder %v1055, 0.0
    %v1228 = vand.u32 %v1055, 2147483648
    %v1229 = vsel %vm1227, %v1228, %v1226
    %v1230 = vrsqrt.pop %v1057
    %v1231 = vmul.f32 %v1057, %v1230
    %vm1232 = vcmp.eq.f32.partialorder %v1057, inf
    %v1233 = vsel %vm1232, %v1057, %v1231
    %vm1234 = vcmp.eq.f32.partialorder %v1057, 0.0
    %v1235 = vand.u32 %v1057, 2147483648
    %v1236 = vsel %vm1234, %v1235, %v1233
    %v1237 = vrsqrt.pop %v1059
    %v1238 = vmul.f32 %v1059, %v1237
    %vm1239 = vcmp.eq.f32.partialorder %v1059, inf
    %v1240 = vsel %vm1239, %v1059, %v1238
    %vm1241 = vcmp.eq.f32.partialorder %v1059, 0.0
    %v1242 = vand.u32 %v1059, 2147483648
    %v1243 = vsel %vm1241, %v1242, %v1240
    %v1244 = vrsqrt.pop %v1061
    %v1245 = vmul.f32 %v1061, %v1244
    %vm1246 = vcmp.eq.f32.partialorder %v1061, inf
    %v1247 = vsel %vm1246, %v1061, %v1245
    %vm1248 = vcmp.eq.f32.partialorder %v1061, 0.0
    %v1249 = vand.u32 %v1061, 2147483648
    %v1250 = vsel %vm1248, %v1249, %v1247
    %v1251 = vrsqrt.pop %v1063
    %v1252 = vmul.f32 %v1063, %v1251
    %vm1253 = vcmp.eq.f32.partialorder %v1063, inf
    %v1254 = vsel %vm1253, %v1063, %v1252
    %vm1255 = vcmp.eq.f32.partialorder %v1063, 0.0
    %v1256 = vand.u32 %v1063, 2147483648
    %v1257 = vsel %vm1255, %v1256, %v1254
    %v1258 = vrsqrt.pop %v1065
    %v1259 = vmul.f32 %v1065, %v1258
    %vm1260 = vcmp.eq.f32.partialorder %v1065, inf
    %v1261 = vsel %vm1260, %v1065, %v1259
    %vm1262 = vcmp.eq.f32.partialorder %v1065, 0.0
    %v1263 = vand.u32 %v1065, 2147483648
    %v1264 = vsel %vm1262, %v1263, %v1261
    %v1265 = vrsqrt.pop %v1067
    %v1266 = vmul.f32 %v1067, %v1265
    %vm1267 = vcmp.eq.f32.partialorder %v1067, inf
    %v1268 = vsel %vm1267, %v1067, %v1266
    %vm1269 = vcmp.eq.f32.partialorder %v1067, 0.0
    %v1270 = vand.u32 %v1067, 2147483648
    %v1271 = vsel %vm1269, %v1270, %v1268
    %v1272 = vrsqrt.pop %v1069
    %v1273 = vmul.f32 %v1069, %v1272
    %vm1274 = vcmp.eq.f32.partialorder %v1069, inf
    %v1275 = vsel %vm1274, %v1069, %v1273
    %vm1276 = vcmp.eq.f32.partialorder %v1069, 0.0
    %v1277 = vand.u32 %v1069, 2147483648
    %v1278 = vsel %vm1276, %v1277, %v1275
    %v1279 = vrsqrt.pop %v1071
    %v1280 = vmul.f32 %v1071, %v1279
    %vm1281 = vcmp.eq.f32.partialorder %v1071, inf
    %v1282 = vsel %vm1281, %v1071, %v1280
    %vm1283 = vcmp.eq.f32.partialorder %v1071, 0.0
    %v1284 = vand.u32 %v1071, 2147483648
    %v1285 = vsel %vm1283, %v1284, %v1282
    %v1286 = vrsqrt.pop %v1073
    %v1287 = vmul.f32 %v1073, %v1286
    %vm1288 = vcmp.eq.f32.partialorder %v1073, inf
    %v1289 = vsel %vm1288, %v1073, %v1287
    %vm1290 = vcmp.eq.f32.partialorder %v1073, 0.0
    %v1291 = vand.u32 %v1073, 2147483648
    %v1292 = vsel %vm1290, %v1291, %v1289
    %v1293 = vrsqrt.pop %v1075
    %v1294 = vmul.f32 %v1075, %v1293
    %vm1295 = vcmp.eq.f32.partialorder %v1075, inf
    %v1296 = vsel %vm1295, %v1075, %v1294
    %vm1297 = vcmp.eq.f32.partialorder %v1075, 0.0
    %v1298 = vand.u32 %v1075, 2147483648
    %v1299 = vsel %vm1297, %v1298, %v1296
    %v1300 = vstv %s41
    %v1301 = vadd.f32 %v1300, %v1082
    %v1302 = vadd.f32 %v1300, %v1089
    %v1303 = vadd.f32 %v1300, %v1096
    %v1304 = vadd.f32 %v1300, %v1103
    %v1305 = vadd.f32 %v1300, %v1110
    %v1306 = vadd.f32 %v1300, %v1117
    %v1307 = vadd.f32 %v1300, %v1124
    %v1308 = vadd.f32 %v1300, %v1131
    %v1309 = vadd.f32 %v1300, %v1138
    %v1310 = vadd.f32 %v1300, %v1145
    %v1311 = vadd.f32 %v1300, %v1152
    %v1312 = vadd.f32 %v1300, %v1159
    %v1313 = vadd.f32 %v1300, %v1166
    %v1314 = vadd.f32 %v1300, %v1173
    %v1315 = vadd.f32 %v1300, %v1180
    %v1316 = vadd.f32 %v1300, %v1187
    %v1317 = vadd.f32 %v1300, %v1194
    %v1318 = vadd.f32 %v1300, %v1201
    %v1319 = vadd.f32 %v1300, %v1208
    %v1320 = vadd.f32 %v1300, %v1215
    %v1321 = vadd.f32 %v1300, %v1222
    %v1322 = vadd.f32 %v1300, %v1229
    %v1323 = vadd.f32 %v1300, %v1236
    %v1324 = vadd.f32 %v1300, %v1243
    %v1325 = vadd.f32 %v1300, %v1250
    %v1326 = vadd.f32 %v1300, %v1257
    %v1327 = vadd.f32 %v1300, %v1264
    %v1328 = vadd.f32 %v1300, %v1271
    %v1329 = vadd.f32 %v1300, %v1278
    %v1330 = vadd.f32 %v1300, %v1285
    %v1331 = vadd.f32 %v1300, %v1292
    %v1332 = vadd.f32 %v1300, %v1299
    %v1333 = vrcp.pop %v1301
    %v1334 = vrcp.pop %v1302
    %v1335 = vrcp.pop %v1303
    %v1336 = vrcp.pop %v1304
    %v1337 = vrcp.pop %v1305
    %v1338 = vrcp.pop %v1306
    %v1339 = vrcp.pop %v1307
    %v1340 = vrcp.pop %v1308
    %v1341 = vrcp.pop %v1309
    %v1342 = vrcp.pop %v1310
    %v1343 = vrcp.pop %v1311
    %v1344 = vrcp.pop %v1312
    %v1345 = vrcp.pop %v1313
    %v1346 = vrcp.pop %v1314
    %v1347 = vrcp.pop %v1315
    %v1348 = vrcp.pop %v1316
    %v1349 = vrcp.pop %v1317
    %v1350 = vrcp.pop %v1318
    %v1351 = vrcp.pop %v1319
    %v1352 = vrcp.pop %v1320
    %v1353 = vrcp.pop %v1321
    %v1354 = vrcp.pop %v1322
    %v1355 = vrcp.pop %v1323
    %v1356 = vrcp.pop %v1324
    %v1357 = vrcp.pop %v1325
    %v1358 = vrcp.pop %v1326
    %v1359 = vrcp.pop %v1327
    %v1360 = vrcp.pop %v1328
    %v1361 = vrcp.pop %v1329
    %v1362 = vrcp.pop %v1330
    %v1363 = vrcp.pop %v1331
    %v1364 = vrcp.pop %v1332
    %v1365 = vstv %s66
    %v1366 = vmul.f32 %v1365, %v1333
    %v1367 = vmul.f32 %v1365, %v1334
    %v1368 = vmul.f32 %v1365, %v1335
    %v1369 = vmul.f32 %v1365, %v1336
    %v1370 = vmul.f32 %v1365, %v1337
    %v1371 = vmul.f32 %v1365, %v1338
    %v1372 = vmul.f32 %v1365, %v1339
    %v1373 = vmul.f32 %v1365, %v1340
    %v1374 = vmul.f32 %v1365, %v1341
    %v1375 = vmul.f32 %v1365, %v1342
    %v1376 = vmul.f32 %v1365, %v1343
    %v1377 = vmul.f32 %v1365, %v1344
    %v1378 = vmul.f32 %v1365, %v1345
    %v1379 = vmul.f32 %v1365, %v1346
    %v1380 = vmul.f32 %v1365, %v1347
    %v1381 = vmul.f32 %v1365, %v1348
    %v1382 = vmul.f32 %v1365, %v1349
    %v1383 = vmul.f32 %v1365, %v1350
    %v1384 = vmul.f32 %v1365, %v1351
    %v1385 = vmul.f32 %v1365, %v1352
    %v1386 = vmul.f32 %v1365, %v1353
    %v1387 = vmul.f32 %v1365, %v1354
    %v1388 = vmul.f32 %v1365, %v1355
    %v1389 = vmul.f32 %v1365, %v1356
    %v1390 = vmul.f32 %v1365, %v1357
    %v1391 = vmul.f32 %v1365, %v1358
    %v1392 = vmul.f32 %v1365, %v1359
    %v1393 = vmul.f32 %v1365, %v1360
    %v1394 = vmul.f32 %v1365, %v1361
    %v1395 = vmul.f32 %v1365, %v1362
    %v1396 = vmul.f32 %v1365, %v1363
    %v1397 = vmul.f32 %v1365, %v1364
    %v1398 = vmul.f32 %v1366, %v106
    %v1399 = vmul.f32 %v1367, %v107
    %v1400 = vmul.f32 %v1368, %v108
    %v1401 = vmul.f32 %v1369, %v109
    %v1402 = vmul.f32 %v1370, %v110
    %v1403 = vmul.f32 %v1371, %v111
    %v1404 = vmul.f32 %v1372, %v112
    %v1405 = vmul.f32 %v1373, %v113
    %v1406 = vmul.f32 %v1374, %v114
    %v1407 = vmul.f32 %v1375, %v115
    %v1408 = vmul.f32 %v1376, %v116
    %v1409 = vmul.f32 %v1377, %v117
    %v1410 = vmul.f32 %v1378, %v118
    %v1411 = vmul.f32 %v1379, %v119
    %v1412 = vmul.f32 %v1380, %v120
    %v1413 = vmul.f32 %v1381, %v121
    %v1414 = vmul.f32 %v1382, %v122
    %v1415 = vmul.f32 %v1383, %v123
    %v1416 = vmul.f32 %v1384, %v124
    %v1417 = vmul.f32 %v1385, %v125
    %v1418 = vmul.f32 %v1386, %v126
    %v1419 = vmul.f32 %v1387, %v127
    %v1420 = vmul.f32 %v1388, %v128
    %v1421 = vmul.f32 %v1389, %v129
    %v1422 = vmul.f32 %v1390, %v130
    %v1423 = vmul.f32 %v1391, %v131
    %v1424 = vmul.f32 %v1392, %v132
    %v1425 = vmul.f32 %v1393, %v133
    %v1426 = vmul.f32 %v1394, %v134
    %v1427 = vmul.f32 %v1395, %v135
    %v1428 = vmul.f32 %v1396, %v136
    %v1429 = vmul.f32 %v1397, %v137
    %v1430 = vadd.f32 %v67, %v1398
    %v1431 = vadd.f32 %v68, %v1399
    %v1432 = vadd.f32 %v69, %v1400
    %v1433 = vadd.f32 %v70, %v1401
    %v1434 = vadd.f32 %v71, %v1402
    %v1435 = vadd.f32 %v72, %v1403
    %v1436 = vadd.f32 %v73, %v1404
    %v1437 = vadd.f32 %v74, %v1405
    %v1438 = vadd.f32 %v75, %v1406
    %v1439 = vadd.f32 %v76, %v1407
    %v1440 = vadd.f32 %v77, %v1408
    %v1441 = vadd.f32 %v78, %v1409
    %v1442 = vadd.f32 %v79, %v1410
    %v1443 = vadd.f32 %v80, %v1411
    %v1444 = vadd.f32 %v81, %v1412
    %v1445 = vadd.f32 %v82, %v1413
    %v1446 = vadd.f32 %v83, %v1414
    %v1447 = vadd.f32 %v84, %v1415
    %v1448 = vadd.f32 %v85, %v1416
    %v1449 = vadd.f32 %v86, %v1417
    %v1450 = vadd.f32 %v87, %v1418
    %v1451 = vadd.f32 %v88, %v1419
    %v1452 = vadd.f32 %v89, %v1420
    %v1453 = vadd.f32 %v90, %v1421
    %v1454 = vadd.f32 %v91, %v1422
    %v1455 = vadd.f32 %v92, %v1423
    %v1456 = vadd.f32 %v93, %v1424
    %v1457 = vadd.f32 %v94, %v1425
    %v1458 = vadd.f32 %v95, %v1426
    %v1459 = vadd.f32 %v96, %v1427
    %v1460 = vadd.f32 %v97, %v1428
    %v1461 = vadd.f32 %v98, %v1429
    %1462 = vst [vmem:[#allocation7] sm:$0xff] %v1430
    %1463 = vst [vmem:[#allocation7 + $0x8] sm:$0xff] %v1431
    %1464 = vst [vmem:[#allocation7 + $0x10] sm:$0xff] %v1432
    %1465 = vst [vmem:[#allocation7 + $0x18] sm:$0xff] %v1433
    %1466 = vst [vmem:[#allocation7 + $0x20] sm:$0xff] %v1434
    %1467 = vst [vmem:[#allocation7 + $0x28] sm:$0xff] %v1435
    %1468 = vst [vmem:[#allocation7 + $0x30] sm:$0xff] %v1436
    %1469 = vst [vmem:[#allocation7 + $0x38] sm:$0xff] %v1437
    %1470 = vst [vmem:[#allocation7 + $0x40] sm:$0xff] %v1438
    %1471 = vst [vmem:[#allocation7 + $0x48] sm:$0xff] %v1439
    %1472 = vst [vmem:[#allocation7 + $0x50] sm:$0xff] %v1440
    %1473 = vst [vmem:[#allocation7 + $0x58] sm:$0xff] %v1441
    %1474 = vst [vmem:[#allocation7 + $0x60] sm:$0xff] %v1442
    %1475 = vst [vmem:[#allocation7 + $0x68] sm:$0xff] %v1443
    %1476 = vst [vmem:[#allocation7 + $0x70] sm:$0xff] %v1444
    %1477 = vst [vmem:[#allocation7 + $0x78] sm:$0xff] %v1445
    %1478 = vst [vmem:[#allocation7 + $0x80] sm:$0xff] %v1446
    %1479 = vst [vmem:[#allocation7 + $0x88] sm:$0xff] %v1447
    %1480 = vst [vmem:[#allocation7 + $0x90] sm:$0xff] %v1448
    %1481 = vst [vmem:[#allocation7 + $0x98] sm:$0xff] %v1449
    %1482 = vst [vmem:[#allocation7 + $0xa0] sm:$0xff] %v1450
    %1483 = vst [vmem:[#allocation7 + $0xa8] sm:$0xff] %v1451
    %1484 = vst [vmem:[#allocation7 + $0xb0] sm:$0xff] %v1452
    %1485 = vst [vmem:[#allocation7 + $0xb8] sm:$0xff] %v1453
    %1486 = vst [vmem:[#allocation7 + $0xc0] sm:$0xff] %v1454
    %1487 = vst [vmem:[#allocation7 + $0xc8] sm:$0xff] %v1455
    %1488 = vst [vmem:[#allocation7 + $0xd0] sm:$0xff] %v1456
    %1489 = vst [vmem:[#allocation7 + $0xd8] sm:$0xff] %v1457
    %1490 = vst [vmem:[#allocation7 + $0xe0] sm:$0xff] %v1458
    %1491 = vst [vmem:[#allocation7 + $0xe8] sm:$0xff] %v1459
    %1492 = vst [vmem:[#allocation7 + $0xf0] sm:$0xff] %v1460
    %1493 = vst [vmem:[#allocation7 + $0xf8] sm:$0xff] %v1461
    %v1494 = vrsqrt.pop %v1008
    %v1495 = vmul.f32 %v1008, %v1494
    %vm1496 = vcmp.eq.f32.partialorder %v1008, inf
    %v1497 = vsel %vm1496, %v1008, %v1495
    %vm1498 = vcmp.eq.f32.partialorder %v1008, 0.0
    %v1499 = vand.u32 %v1008, 2147483648
    %v1500 = vsel %vm1498, %v1499, %v1497
    %v1501 = vrsqrt.pop %v1010
    %v1502 = vmul.f32 %v1010, %v1501
    %vm1503 = vcmp.eq.f32.partialorder %v1010, inf
    %v1504 = vsel %vm1503, %v1010, %v1502
    %vm1505 = vcmp.eq.f32.partialorder %v1010, 0.0
    %v1506 = vand.u32 %v1010, 2147483648
    %v1507 = vsel %vm1505, %v1506, %v1504
    %v1508 = vadd.f32 %v1300, %v1500
    %v1509 = vadd.f32 %v1300, %v1507
    %v1510 = vrcp.pop %v1508
    %v1511 = vrcp.pop %v1509
    %v1512 = vmul.f32 %v1365, %v1510
    %v1513 = vmul.f32 %v1365, %v1511
    %v1514 = vadd.f32 %v1512, 1.0
    %v1515 = vadd.f32 %v1513, 1.0
    %v1516 = vlog2.pop %v1514
    %v1517 = vmul.f32 %v1516, 0.6931472
    %v1518 = vlog2.pop %v1515
    %v1519 = vmul.f32 %v1518, 0.6931472
    %v1520 = vmul.f32 %v1517, 127.0
    %v1521 = vmul.f32 %v1519, 127.0
    %s1522 = smul.f32 %s41, %s66
    %v1523 = vstv %s1522
    %v1524 = vmul.f32 %v1523, %v1510
    %v1525 = vmul.f32 %v1523, %v1511
    %v1526 = vmul.f32 %v1524, %v1510
    %v1527 = vmul.f32 %v1525, %v1511
    %v1528 = vadd.f32 %v1526, 1.0
    %v1529 = vadd.f32 %v1527, 1.0
    %v1530 = vlog2.pop %v1528
    %v1531 = vmul.f32 %v1530, 0.6931472
    %v1532 = vlog2.pop %v1529
    %v1533 = vmul.f32 %v1532, 0.6931472
    %v1534 = vadd.f32 %v1520, %v1531
    %v1535 = vadd.f32 %v1521, %v1533
    %v1538 = vcombine.low %v1534, %v1535
    %v1540 = vunpack.c.l.s4 1966171168
    %v1541 = vunpack.c.0.s8 %v1540
    %v1542 = vlaneseq
    %v1543 = vshrl.u32 %v1542, 7
    %v1544 = vsub.s32 %v1541, %v1543
    %v1545 = vrot.slane %v1538, %v1544
    %v1547 = vunpack.c.l.s4 1966171168
    %v1548 = vunpack.c.0.s8 %v1547
    %v1549 = vlaneseq
    %v1550 = vshrl.u32 %v1549, 7
    %v1551 = vsub.s32 %v1548, %v1550
    %v1552 = vrot.slane %v1545, %v1551
    %v1554 = vlaneseq
    %vm1555 = vcmp.ge.s32.totalorder %v1554, 0
    %vm1556 = vcmp.lt.s32.totalorder %v1554, 256
    %vm1557 = vmand %vm1555, %vm1556
    %1558 = vst.msk [vmem:[#allocation8] sm:$0x3] %vm1557, %v1552
    // Predicated region
    $region22: #{tpu_custom_call.1} parent=1 // pred_check
      _
    $region23: #{tpu_custom_call.1} parent=1 // pred_check_branch
      %1560 = sbr.rel (0) target = $region25
    $region24: #{tpu_custom_call.1} parent=1 // pred_region
      %s1562 = ssub.s32 4096, 4096
      %1563 = vsyncadd [#allocation6], %s1562
      %s1564 = sshll.u32 [#allocation7], 4
      %s1565 = int_to_ptr.vmem [resolvable:$true] %s1564
      %1570 = dma.vmem_to_hbm [thread:$0]  %s1565, 4096, %s4, [#allocation6], 128, 128, 8
    $region25: #{tpu_custom_call.1} parent=1 // pred_fallthru
      _
    // Predicated region
    $region26: #{tpu_custom_call.1} parent=1 // pred_check
      _
    $region27: #{tpu_custom_call.1} parent=1 // pred_check_branch
      %1572 = sbr.rel (0) target = $region29
    $region28: #{tpu_custom_call.1} parent=1 // pred_region
      %s1574 = ssub.s32 32, 32
      %1575 = vsyncadd [#allocation9], %s1574
      %s1577 = sshll.u32 [#allocation8], 4
      %s1578 = int_to_ptr.vmem [resolvable:$true] %s1577
      %1580 = dma.vmem_to_hbm [thread:$0]  %s1578, 32, %s5, [#allocation9]
    $region29: #{tpu_custom_call.1} parent=1 // pred_fallthru
      _
    // Predicated region
    $region30: #{tpu_custom_call.1} parent=1 // pred_check
      _
    $region31: #{tpu_custom_call.1} parent=1 // pred_check_branch
      %1582 = sbr.rel (0) target = $region33
    $region32: #{tpu_custom_call.1} parent=1 // pred_region
      %1583 = dma.done [#allocation6], 4096
    $region33: #{tpu_custom_call.1} parent=1 // pred_fallthru
      _
    // Predicated region
    $region34: #{tpu_custom_call.1} parent=1 // pred_check
      _
    $region35: #{tpu_custom_call.1} parent=1 // pred_check_branch
      %1585 = sbr.rel (0) target = $region37
    $region36: #{tpu_custom_call.1} parent=1 // pred_region
      %1586 = dma.done [#allocation9], 32
    $region37: #{tpu_custom_call.1} parent=1 // pred_fallthru
      _
    %1587 = vsyncpa [#allocation5], 1
    %1588 = vsyncpa [#allocation6], 1
    %1589 = vsyncpa [#allocation9], 1

</llo_original>
